<compile_context>
chip_gen: v7x
topology: tpu7x:2x2x1
jax: 0.10.0
libtpu: 0.0.40
codegen_flags: <defaults>
</compile_context>

<pallas_src>
import functools
import math

import jax
import jax.numpy as jnp
from jax.experimental import pallas as pl
from jax.experimental.pallas import tpu as pltpu


def _round_up(x, m):
    return ((x + m - 1) // m) * m


# ----------------------------------------------------------------------------
# Fused forward kernel (no grid: everything is VMEM resident).
#   refs = x2d, [wih, whh, b]*n_lstm, [w, b]*n_linear, wo, bo, out, yv, xp
# lstm_meta[l] = (H, gs, hw, wg):
#   H  = true hidden size
#   gs = per-gate lane stride inside the fused gate axis
#   hw = padded width of h/c/y          (128, or round_up(H,128) when 4H > 128)
#   wg = padded width of the gate axis  (128 when packed, else 4*gs)
# Packed layout (4H <= 128): gate k occupies lanes [k*H, k*H+H) of one 128-lane tile.
# Padded lanes of h/c/y may hold bounded garbage; every consumer weight has zero rows
# there, so it never leaks into real lanes.
# ----------------------------------------------------------------------------
def _fused_forward_kernel(*refs, T, Bp, lstm_meta, n_linear):
    n_lstm = len(lstm_meta)
    idx = 0
    x_ref = refs[idx]; idx += 1
    lstm_refs = []
    for _ in range(n_lstm):
        lstm_refs.append(refs[idx:idx + 3]); idx += 3
    lin_refs = []
    for _ in range(n_linear):
        lin_refs.append(refs[idx:idx + 2]); idx += 2
    wo_ref, bo_ref = refs[idx], refs[idx + 1]; idx += 2
    out_ref = refs[idx]; idx += 1
    yv_ref = refs[idx]; idx += 1     # per-step outputs of the current (non-last) layer
    xp_ref = refs[idx]               # batched input projections of the current layer

    f32 = jnp.float32
    rows = T * Bp
    acc = None

    for layer, (wih_ref, whh_ref, b_ref) in enumerate(lstm_refs):
        H, gs, hw, wg = lstm_meta[layer]
        last = layer == n_lstm - 1
        gates_packed = wg == 128     # all four gates inside one 128-lane tile

        # ---- batched input projection for ALL T steps: one matmul + one bias add
        if layer == 0:
            src = x_ref[...]
        else:
            prev_hw = lstm_meta[layer - 1][2]
            src = yv_ref[pl.ds(0, rows), pl.ds(0, prev_hw)]
        xp_ref[pl.ds(0, rows), pl.ds(0, wg)] = (
            jnp.dot(src, wih_ref[...], preferred_element_type=f32) + b_ref[...])

        whh = whh_ref[...]
        h = jnp.zeros((Bp, hw), f32)
        c = jnp.zeros((Bp, hw), f32)
        if last:
            acc = jnp.zeros((Bp, hw), f32)

        # TODO(synk): latch whh in the MXU across the time loop
        #             (pltpu.matmul_push_rhs / matmul_acc_lhs / matmul_pop) to avoid
        #             re-pushing the identical RHS every step.
        for t in range(T):           # static unroll; live state per step is ~3 vregs
            xp_t = xp_ref[pl.ds(t * Bp, Bp), pl.ds(0, wg)]
            gates = xp_t + jnp.dot(h, whh, preferred_element_type=f32)   # (Bp, wg)
            sg = jax.nn.sigmoid(gates)   # single EUP pass over the packed gate tile
            th = jnp.tanh(gates)
            if gates_packed:
                # align each gate with the h/c lanes [0, H) via XLU lane rotation
                i_g = sg
                f_g = pltpu.roll(sg, 128 - 1 * gs, axis=1)
                g_g = pltpu.roll(th, 128 - 2 * gs, axis=1)
                o_g = pltpu.roll(sg, 128 - 3 * gs, axis=1)
            else:                    # one 128-multiple slot per gate, aligned slices
                i_g = sg[:, 0 * gs:1 * gs]
                f_g = sg[:, 1 * gs:2 * gs]
                g_g = th[:, 2 * gs:3 * gs]
                o_g = sg[:, 3 * gs:4 * gs]
            c = f_g * c + i_g * g_g
            h = o_g * jnp.tanh(c)
            y = jnp.tanh(h)          # lstm_activation = tanh
            if last:
                acc = acc + y        # running time-sum (1/T folded into next weight)
            else:
                yv_ref[pl.ds(t * Bp, Bp), pl.ds(0, hw)] = y

    # ---- Linear stack (+ ReLU) and output Linear(in, 1) --------------------------
    m = acc                          # time-mean scale already folded into the weights
    for (w_ref, bl_ref) in lin_refs:
        m = jnp.maximum(
            jnp.dot(m, w_ref[...], preferred_element_type=f32) + bl_ref[...], 0.0)
    out = jnp.dot(m, wo_ref[...], preferred_element_type=f32) + bo_ref[...]
    out_ref[...] = out.astype(out_ref.dtype)


# ----------------------------------------------------------------------------
# One-time weight packing (hoisted out of the forward path).
# ----------------------------------------------------------------------------
def _pack_gates(w, rows, H, gs, wg):
    """(in, 4H) gate-fused matrix -> (rows, wg) with gate k at cols [k*gs, k*gs+H)."""
    w = jnp.asarray(w, jnp.float32)
    out = jnp.zeros((rows, wg), jnp.float32)
    for k in range(4):
        out = out.at[:w.shape[0], k * gs:k * gs + H].set(w[:, k * H:(k + 1) * H])
    return out


def prepare_weights(weights, T):
    """Pack/pad raw weights into the layouts the kernel consumes.  Call ONCE."""
    lstm_meta = []
    packed = []
    prev_hw = None
    for li, (wih, whh, b) in enumerate(weights["lstm"]):
        H = whh.shape[0]
        if 4 * H <= 128:                       # packed: all gates in one 128-lane tile
            gs, hw, wg = H, 128, 128
        else:                                  # fallback: one 128-multiple slot per gate
            gs = _round_up(H, 128); hw, wg = gs, 4 * gs
        rows_ih = wih.shape[0] if li == 0 else prev_hw
        packed += [_pack_gates(wih, rows_ih, H, gs, wg),
                   _pack_gates(whh, hw, H, gs, wg),
                   _pack_gates(b, 1, H, gs, wg)]
        lstm_meta.append((H, gs, hw, wg))
        prev_hw = hw

    H_last, _, hw_last, _ = lstm_meta[-1]
    scale = 1.0 / float(T)                     # fold the time-mean into the first consumer
    need_pad = True
    for (w, bl) in weights["linear"]:
        w = jnp.asarray(w, jnp.float32)
        if need_pad:                           # consumes the padded mean accumulator
            w = jnp.zeros((hw_last, w.shape[1]), jnp.float32).at[:H_last, :].set(w * scale)
            need_pad = False
        packed += [w, jnp.asarray(bl, jnp.float32)]
    wo, bo = weights["output"]
    wo = jnp.asarray(wo, jnp.float32)
    if need_pad:                               # no hidden linear layers
        wo = jnp.zeros((hw_last, 1), jnp.float32).at[:H_last, :].set(wo * scale)
    packed += [wo, jnp.asarray(bo, jnp.float32)]
    return tuple(packed), tuple(lstm_meta), len(weights["linear"])


# ----------------------------------------------------------------------------
# Jitted forward: per-call work = transpose/pad/reshape of X + one pallas_call.
# ----------------------------------------------------------------------------
@functools.partial(jax.jit, static_argnames=("lstm_meta", "n_linear"))
def forward(X, packed, lstm_meta, n_linear):
    B, T, F = X.shape
    Bp = _round_up(B, 8)                                   # sublane-multiple batch
    x = jnp.transpose(X, (1, 0, 2)).astype(jnp.float32)    # (T, B, F)
    x = jnp.pad(x, ((0, 0), (0, Bp - B), (0, 0)))          # (T, Bp, F)
    x2d = x.reshape(T * Bp, F)

    max_hw = max(m[2] for m in lstm_meta)
    max_wg = max(m[3] for m in lstm_meta)

    # advisory cost so XLA schedules surrounding ops around the custom call
    flops, trans = 0, 0
    prev = F
    for (_, _, hw, wg) in lstm_meta:
        flops += 2 * T * Bp * prev * wg + 2 * T * Bp * hw * wg
        trans += T * Bp * (2 * wg + 2 * hw)
        prev = hw
    args = (x2d,) + tuple(packed)
    for a in packed[3 * len(lstm_meta)::2]:                # linear / output weights
        flops += 2 * Bp * int(a.size)
    bytes_accessed = 4 * (sum(int(a.size) for a in args) + Bp)

    kernel = functools.partial(_fused_forward_kernel, T=T, Bp=Bp,
                               lstm_meta=lstm_meta, n_linear=n_linear)
    vmem = pl.BlockSpec(memory_space=pltpu.MemorySpace.VMEM)
    out = pl.pallas_call(
        kernel,
        out_shape=jax.ShapeDtypeStruct((Bp, 1), jnp.float32),
        in_specs=[vmem] * len(args),
        out_specs=vmem,
        scratch_shapes=[pltpu.VMEM((T * Bp, max_hw), jnp.float32),   # layer outputs
                        pltpu.VMEM((T * Bp, max_wg), jnp.float32)],  # input projections
        cost_estimate=pl.CostEstimate(flops=int(flops), transcendentals=int(trans),
                                      bytes_accessed=int(bytes_accessed)),
    )(*args)
    # TODO(synk): for large batches add a "parallel" batch-tile grid axis so v7x's
    #             second TensorCore is used; unnecessary at B=2.
    # TODO(synk): cast MXU operands to bf16 (keep gate math / c,h state in f32) for
    #             v5e/v6e/v7x once tolerances are re-validated.
    return out[:B, 0]                                       # torch.flatten


# ----------------------------------------------------------------------------
# Parameter init (PyTorch-style uniform(-1/sqrt(H), 1/sqrt(H)); b_ih and b_hh
# drawn separately and summed to keep the same init distribution).
# ----------------------------------------------------------------------------
def init_weights(key, params):
    def uni(k, shape, scale):
        return jax.random.uniform(k, shape, jnp.float32, -scale, scale)

    weights = {"lstm": [], "linear": [], "output": None}
    in_size = params["input_size"]
    for H in params["lstm_layers"]:
        key, k1, k2, k3, k4 = jax.random.split(key, 5)
        s = 1.0 / math.sqrt(H)
        weights["lstm"].append((
            uni(k1, (in_size, 4 * H), s),                      # W_ih^T, gates (i,f,g,o)
            uni(k2, (H, 4 * H), s),                            # W_hh^T
            uni(k3, (1, 4 * H), s) + uni(k4, (1, 4 * H), s),   # b_ih + b_hh
        ))
        in_size = H
    for L in params["linear_layers"]:
        key, k1, k2 = jax.random.split(key, 3)
        s = 1.0 / math.sqrt(in_size)
        weights["linear"].append((uni(k1, (in_size, L), s), uni(k2, (1, L), s)))
        in_size = L
    key, k1, k2 = jax.random.split(key, 3)
    s = 1.0 / math.sqrt(in_size)
    weights["output"] = (uni(k1, (in_size, 1), s), uni(k2, (1, 1), s))
    return weights
    # TODO(synk): nn.Dropout layers omitted (default params['dropout_layers'] is empty;
    #             dropout is identity at inference anyway).


# ----------------------------------------------------------------------------
# Pure-JAX reference for correctness checking
# ----------------------------------------------------------------------------
def forward_ref(X_btf, weights):
    x = X_btf
    B, T, _ = x.shape
    for (wih, whh, b) in weights["lstm"]:
        H = whh.shape[0]
        h = jnp.zeros((B, H), jnp.float32)
        c = jnp.zeros((B, H), jnp.float32)
        ys = []
        for t in range(T):
            gates = x[:, t, :] @ wih + h @ whh + b
            i_g = jax.nn.sigmoid(gates[:, :H])
            f_g = jax.nn.sigmoid(gates[:, H:2 * H])
            g_g = jnp.tanh(gates[:, 2 * H:3 * H])
            o_g = jax.nn.sigmoid(gates[:, 3 * H:])
            c = f_g * c + i_g * g_g
            h = o_g * jnp.tanh(c)
            ys.append(jnp.tanh(h))
        x = jnp.stack(ys, axis=1)
    m = jnp.mean(x, axis=1)
    for (w, bl) in weights["linear"]:
        m = jnp.maximum(m @ w + bl, 0.0)
    wo, bo = weights["output"]
    return (m @ wo + bo).reshape(-1)


if __name__ == "__main__":
    params = {
        "input_size": 16,
        "lstm_layers": [32, 16],
        "linear_layers": [32],
    }
    B, T = 2, 8

    key = jax.random.PRNGKey(0)
    key, kx, kw = jax.random.split(key, 3)
    X = jax.random.normal(kx, (B, T, params["input_size"]), jnp.float32)
    weights = init_weights(kw, params)

    packed, lstm_meta, n_linear = prepare_weights(weights, T)   # one-time, hoisted

    out = forward(X, packed, lstm_meta=lstm_meta, n_linear=n_linear)
    out = jax.block_until_ready(out)

    ref = forward_ref(X, weights)
    assert out.shape == (B,), out.shape
    assert jnp.allclose(out, ref, rtol=1e-3, atol=1e-3), (out, ref)
    print("KERNEL_OK")
</pallas_src>

<mosaic_0001>
module attributes {stable_mosaic.version = 11 : i64} {
  func.func @_fused_forward_kernel(%arg0: memref<64x16xf32, #tpu.memory_space<vmem>>, %arg1: memref<16x128xf32, #tpu.memory_space<vmem>>, %arg2: memref<128x128xf32, #tpu.memory_space<vmem>>, %arg3: memref<1x128xf32, #tpu.memory_space<vmem>>, %arg4: memref<128x128xf32, #tpu.memory_space<vmem>>, %arg5: memref<128x128xf32, #tpu.memory_space<vmem>>, %arg6: memref<1x128xf32, #tpu.memory_space<vmem>>, %arg7: memref<128x32xf32, #tpu.memory_space<vmem>>, %arg8: memref<1x32xf32, #tpu.memory_space<vmem>>, %arg9: memref<32x1xf32, #tpu.memory_space<vmem>>, %arg10: memref<1x1xf32, #tpu.memory_space<vmem>>, %arg11: memref<8x1xf32, #tpu.memory_space<vmem>>, %arg12: memref<64x128xf32, #tpu.memory_space<vmem>>, %arg13: memref<64x128xf32, #tpu.memory_space<vmem>>) attributes {dimension_semantics = [], scalar_prefetch = 0 : i64, scratch_operands = 2 : i64, tpu.core_type = #tpu.core_type<tc>} {
    %c0 = arith.constant 0 : index
    %c0_0 = arith.constant 0 : index
    %0 = vector.load %arg0[%c0, %c0_0] : memref<64x16xf32, #tpu.memory_space<vmem>>, vector<64x16xf32>
    %c0_1 = arith.constant 0 : index
    %c0_2 = arith.constant 0 : index
    %1 = vector.load %arg1[%c0_1, %c0_2] : memref<16x128xf32, #tpu.memory_space<vmem>>, vector<16x128xf32>
    %cst = arith.constant dense<0.000000e+00> : vector<64x128xf32>
    %2 = tpu.matmul %0, %1, %cst {dimension_numbers = #tpu.dot_dimension_numbers<[1], [0], [0], [1], [0, 0, 1, 1], [], []>} : vector<64x16xf32>, vector<16x128xf32>, vector<64x128xf32> -> vector<64x128xf32>
    %c0_3 = arith.constant 0 : index
    %c0_4 = arith.constant 0 : index
    %3 = vector.load %arg3[%c0_3, %c0_4] : memref<1x128xf32, #tpu.memory_space<vmem>>, vector<1x128xf32>
    %4 = vector.broadcast %3 : vector<1x128xf32> to vector<64x128xf32>
    %5 = arith.addf %2, %4 : vector<64x128xf32>
    %c0_5 = arith.constant 0 : index
    %c0_6 = arith.constant 0 : index
    %6 = vector.load %arg13[%c0_5, %c0_6] : memref<64x128xf32, #tpu.memory_space<vmem>>, vector<64x128xf32>
    tpu.vector_store %arg13[%c0_5, %c0_6], %5 {strides = array<i32>} : memref<64x128xf32, #tpu.memory_space<vmem>>, vector<64x128xf32>,
    %c0_7 = arith.constant 0 : index
    %c0_8 = arith.constant 0 : index
    %7 = vector.load %arg2[%c0_7, %c0_8] : memref<128x128xf32, #tpu.memory_space<vmem>>, vector<128x128xf32>
    %cst_9 = arith.constant 0.000000e+00 : f32
    %8 = vector.broadcast %cst_9 : f32 to vector<8x128xf32>
    %cst_10 = arith.constant 0.000000e+00 : f32
    %9 = vector.broadcast %cst_10 : f32 to vector<8x128xf32>
    %c0_11 = arith.constant 0 : index
    %c0_12 = arith.constant 0 : index
    %10 = vector.load %arg13[%c0_11, %c0_12] : memref<64x128xf32, #tpu.memory_space<vmem>>, vector<8x128xf32>
    %cst_13 = arith.constant dense<0.000000e+00> : vector<8x128xf32>
    %11 = tpu.matmul %8, %7, %cst_13 {dimension_numbers = #tpu.dot_dimension_numbers<[1], [0], [0], [1], [0, 0, 1, 1], [], []>} : vector<8x128xf32>, vector<128x128xf32>, vector<8x128xf32> -> vector<8x128xf32>
    %12 = arith.addf %10, %11 : vector<8x128xf32>
    %13 = arith.negf %12 : vector<8x128xf32>
    %14 = math.exp %13 : vector<8x128xf32>
    %cst_14 = arith.constant 1.000000e+00 : f32
    %15 = vector.broadcast %cst_14 : f32 to vector<8x128xf32>
    %16 = arith.addf %15, %14 : vector<8x128xf32>
    %17 = arith.divf %15, %16 : vector<8x128xf32>
    %18 = math.tanh %12 : vector<8x128xf32>
    %c96_i32 = arith.constant 96 : i32
    %19 = tpu.dynamic_rotate %17 by %c96_i32 dim 1 : vector<8x128xf32>, i32 -> vector<8x128xf32>
    %c64_i32 = arith.constant 64 : i32
    %20 = tpu.dynamic_rotate %18 by %c64_i32 dim 1 : vector<8x128xf32>, i32 -> vector<8x128xf32>
    %c32_i32 = arith.constant 32 : i32
    %21 = tpu.dynamic_rotate %17 by %c32_i32 dim 1 : vector<8x128xf32>, i32 -> vector<8x128xf32>
    %22 = arith.mulf %19, %9 : vector<8x128xf32>
    %23 = arith.mulf %17, %20 : vector<8x128xf32>
    %24 = arith.addf %22, %23 : vector<8x128xf32>
    %25 = math.tanh %24 : vector<8x128xf32>
    %26 = arith.mulf %21, %25 : vector<8x128xf32>
    %27 = math.tanh %26 : vector<8x128xf32>
    %c0_15 = arith.constant 0 : index
    %c0_16 = arith.constant 0 : index
    %28 = vector.load %arg12[%c0_15, %c0_16] : memref<64x128xf32, #tpu.memory_space<vmem>>, vector<8x128xf32>
    tpu.vector_store %arg12[%c0_15, %c0_16], %27 {strides = array<i32>} : memref<64x128xf32, #tpu.memory_space<vmem>>, vector<8x128xf32>,
    %c8 = arith.constant 8 : index
    %c0_17 = arith.constant 0 : index
    %29 = vector.load %arg13[%c8, %c0_17] : memref<64x128xf32, #tpu.memory_space<vmem>>, vector<8x128xf32>
    %cst_18 = arith.constant dense<0.000000e+00> : vector<8x128xf32>
    %30 = tpu.matmul %26, %7, %cst_18 {dimension_numbers = #tpu.dot_dimension_numbers<[1], [0], [0], [1], [0, 0, 1, 1], [], []>} : vector<8x128xf32>, vector<128x128xf32>, vector<8x128xf32> -> vector<8x128xf32>
    %31 = arith.addf %29, %30 : vector<8x128xf32>
    %32 = arith.negf %31 : vector<8x128xf32>
    %33 = math.exp %32 : vector<8x128xf32>
    %cst_19 = arith.constant 1.000000e+00 : f32
    %34 = vector.broadcast %cst_19 : f32 to vector<8x128xf32>
    %35 = arith.addf %34, %33 : vector<8x128xf32>
    %36 = arith.divf %34, %35 : vector<8x128xf32>
    %37 = math.tanh %31 : vector<8x128xf32>
    %c96_i32_20 = arith.constant 96 : i32
    %38 = tpu.dynamic_rotate %36 by %c96_i32_20 dim 1 : vector<8x128xf32>, i32 -> vector<8x128xf32>
    %c64_i32_21 = arith.constant 64 : i32
    %39 = tpu.dynamic_rotate %37 by %c64_i32_21 dim 1 : vector<8x128xf32>, i32 -> vector<8x128xf32>
    %c32_i32_22 = arith.constant 32 : i32
    %40 = tpu.dynamic_rotate %36 by %c32_i32_22 dim 1 : vector<8x128xf32>, i32 -> vector<8x128xf32>
    %41 = arith.mulf %38, %24 : vector<8x128xf32>
    %42 = arith.mulf %36, %39 : vector<8x128xf32>
    %43 = arith.addf %41, %42 : vector<8x128xf32>
    %44 = math.tanh %43 : vector<8x128xf32>
    %45 = arith.mulf %40, %44 : vector<8x128xf32>
    %46 = math.tanh %45 : vector<8x128xf32>
    %c8_23 = arith.constant 8 : index
    %c0_24 = arith.constant 0 : index
    %47 = vector.load %arg12[%c8_23, %c0_24] : memref<64x128xf32, #tpu.memory_space<vmem>>, vector<8x128xf32>
    tpu.vector_store %arg12[%c8_23, %c0_24], %46 {strides = array<i32>} : memref<64x128xf32, #tpu.memory_space<vmem>>, vector<8x128xf32>,
    %c16 = arith.constant 16 : index
    %c0_25 = arith.constant 0 : index
    %48 = vector.load %arg13[%c16, %c0_25] : memref<64x128xf32, #tpu.memory_space<vmem>>, vector<8x128xf32>
    %cst_26 = arith.constant dense<0.000000e+00> : vector<8x128xf32>
    %49 = tpu.matmul %45, %7, %cst_26 {dimension_numbers = #tpu.dot_dimension_numbers<[1], [0], [0], [1], [0, 0, 1, 1], [], []>} : vector<8x128xf32>, vector<128x128xf32>, vector<8x128xf32> -> vector<8x128xf32>
    %50 = arith.addf %48, %49 : vector<8x128xf32>
    %51 = arith.negf %50 : vector<8x128xf32>
    %52 = math.exp %51 : vector<8x128xf32>
    %cst_27 = arith.constant 1.000000e+00 : f32
    %53 = vector.broadcast %cst_27 : f32 to vector<8x128xf32>
    %54 = arith.addf %53, %52 : vector<8x128xf32>
    %55 = arith.divf %53, %54 : vector<8x128xf32>
    %56 = math.tanh %50 : vector<8x128xf32>
    %c96_i32_28 = arith.constant 96 : i32
    %57 = tpu.dynamic_rotate %55 by %c96_i32_28 dim 1 : vector<8x128xf32>, i32 -> vector<8x128xf32>
    %c64_i32_29 = arith.constant 64 : i32
    %58 = tpu.dynamic_rotate %56 by %c64_i32_29 dim 1 : vector<8x128xf32>, i32 -> vector<8x128xf32>
    %c32_i32_30 = arith.constant 32 : i32
    %59 = tpu.dynamic_rotate %55 by %c32_i32_30 dim 1 : vector<8x128xf32>, i32 -> vector<8x128xf32>
    %60 = arith.mulf %57, %43 : vector<8x128xf32>
    %61 = arith.mulf %55, %58 : vector<8x128xf32>
    %62 = arith.addf %60, %61 : vector<8x128xf32>
    %63 = math.tanh %62 : vector<8x128xf32>
    %64 = arith.mulf %59, %63 : vector<8x128xf32>
    %65 = math.tanh %64 : vector<8x128xf32>
    %c16_31 = arith.constant 16 : index
    %c0_32 = arith.constant 0 : index
    %66 = vector.load %arg12[%c16_31, %c0_32] : memref<64x128xf32, #tpu.memory_space<vmem>>, vector<8x128xf32>
    tpu.vector_store %arg12[%c16_31, %c0_32], %65 {strides = array<i32>} : memref<64x128xf32, #tpu.memory_space<vmem>>, vector<8x128xf32>,
    %c24 = arith.constant 24 : index
    %c0_33 = arith.constant 0 : index
    %67 = vector.load %arg13[%c24, %c0_33] : memref<64x128xf32, #tpu.memory_space<vmem>>, vector<8x128xf32>
    %cst_34 = arith.constant dense<0.000000e+00> : vector<8x128xf32>
    %68 = tpu.matmul %64, %7, %cst_34 {dimension_numbers = #tpu.dot_dimension_numbers<[1], [0], [0], [1], [0, 0, 1, 1], [], []>} : vector<8x128xf32>, vector<128x128xf32>, vector<8x128xf32> -> vector<8x128xf32>
    %69 = arith.addf %67, %68 : vector<8x128xf32>
    %70 = arith.negf %69 : vector<8x128xf32>
    %71 = math.exp %70 : vector<8x128xf32>
    %cst_35 = arith.constant 1.000000e+00 : f32
    %72 = vector.broadcast %cst_35 : f32 to vector<8x128xf32>
    %73 = arith.addf %72, %71 : vector<8x128xf32>
    %74 = arith.divf %72, %73 : vector<8x128xf32>
    %75 = math.tanh %69 : vector<8x128xf32>
    %c96_i32_36 = arith.constant 96 : i32
    %76 = tpu.dynamic_rotate %74 by %c96_i32_36 dim 1 : vector<8x128xf32>, i32 -> vector<8x128xf32>
    %c64_i32_37 = arith.constant 64 : i32
    %77 = tpu.dynamic_rotate %75 by %c64_i32_37 dim 1 : vector<8x128xf32>, i32 -> vector<8x128xf32>
    %c32_i32_38 = arith.constant 32 : i32
    %78 = tpu.dynamic_rotate %74 by %c32_i32_38 dim 1 : vector<8x128xf32>, i32 -> vector<8x128xf32>
    %79 = arith.mulf %76, %62 : vector<8x128xf32>
    %80 = arith.mulf %74, %77 : vector<8x128xf32>
    %81 = arith.addf %79, %80 : vector<8x128xf32>
    %82 = math.tanh %81 : vector<8x128xf32>
    %83 = arith.mulf %78, %82 : vector<8x128xf32>
    %84 = math.tanh %83 : vector<8x128xf32>
    %c24_39 = arith.constant 24 : index
    %c0_40 = arith.constant 0 : index
    %85 = vector.load %arg12[%c24_39, %c0_40] : memref<64x128xf32, #tpu.memory_space<vmem>>, vector<8x128xf32>
    tpu.vector_store %arg12[%c24_39, %c0_40], %84 {strides = array<i32>} : memref<64x128xf32, #tpu.memory_space<vmem>>, vector<8x128xf32>,
    %c32 = arith.constant 32 : index
    %c0_41 = arith.constant 0 : index
    %86 = vector.load %arg13[%c32, %c0_41] : memref<64x128xf32, #tpu.memory_space<vmem>>, vector<8x128xf32>
    %cst_42 = arith.constant dense<0.000000e+00> : vector<8x128xf32>
    %87 = tpu.matmul %83, %7, %cst_42 {dimension_numbers = #tpu.dot_dimension_numbers<[1], [0], [0], [1], [0, 0, 1, 1], [], []>} : vector<8x128xf32>, vector<128x128xf32>, vector<8x128xf32> -> vector<8x128xf32>
    %88 = arith.addf %86, %87 : vector<8x128xf32>
    %89 = arith.negf %88 : vector<8x128xf32>
    %90 = math.exp %89 : vector<8x128xf32>
    %cst_43 = arith.constant 1.000000e+00 : f32
    %91 = vector.broadcast %cst_43 : f32 to vector<8x128xf32>
    %92 = arith.addf %91, %90 : vector<8x128xf32>
    %93 = arith.divf %91, %92 : vector<8x128xf32>
    %94 = math.tanh %88 : vector<8x128xf32>
    %c96_i32_44 = arith.constant 96 : i32
    %95 = tpu.dynamic_rotate %93 by %c96_i32_44 dim 1 : vector<8x128xf32>, i32 -> vector<8x128xf32>
    %c64_i32_45 = arith.constant 64 : i32
    %96 = tpu.dynamic_rotate %94 by %c64_i32_45 dim 1 : vector<8x128xf32>, i32 -> vector<8x128xf32>
    %c32_i32_46 = arith.constant 32 : i32
    %97 = tpu.dynamic_rotate %93 by %c32_i32_46 dim 1 : vector<8x128xf32>, i32 -> vector<8x128xf32>
    %98 = arith.mulf %95, %81 : vector<8x128xf32>
    %99 = arith.mulf %93, %96 : vector<8x128xf32>
    %100 = arith.addf %98, %99 : vector<8x128xf32>
    %101 = math.tanh %100 : vector<8x128xf32>
    %102 = arith.mulf %97, %101 : vector<8x128xf32>
    %103 = math.tanh %102 : vector<8x128xf32>
    %c32_47 = arith.constant 32 : index
    %c0_48 = arith.constant 0 : index
    %104 = vector.load %arg12[%c32_47, %c0_48] : memref<64x128xf32, #tpu.memory_space<vmem>>, vector<8x128xf32>
    tpu.vector_store %arg12[%c32_47, %c0_48], %103 {strides = array<i32>} : memref<64x128xf32, #tpu.memory_space<vmem>>, vector<8x128xf32>,
    %c40 = arith.constant 40 : index
    %c0_49 = arith.constant 0 : index
    %105 = vector.load %arg13[%c40, %c0_49] : memref<64x128xf32, #tpu.memory_space<vmem>>, vector<8x128xf32>
    %cst_50 = arith.constant dense<0.000000e+00> : vector<8x128xf32>
    %106 = tpu.matmul %102, %7, %cst_50 {dimension_numbers = #tpu.dot_dimension_numbers<[1], [0], [0], [1], [0, 0, 1, 1], [], []>} : vector<8x128xf32>, vector<128x128xf32>, vector<8x128xf32> -> vector<8x128xf32>
    %107 = arith.addf %105, %106 : vector<8x128xf32>
    %108 = arith.negf %107 : vector<8x128xf32>
    %109 = math.exp %108 : vector<8x128xf32>
    %cst_51 = arith.constant 1.000000e+00 : f32
    %110 = vector.broadcast %cst_51 : f32 to vector<8x128xf32>
    %111 = arith.addf %110, %109 : vector<8x128xf32>
    %112 = arith.divf %110, %111 : vector<8x128xf32>
    %113 = math.tanh %107 : vector<8x128xf32>
    %c96_i32_52 = arith.constant 96 : i32
    %114 = tpu.dynamic_rotate %112 by %c96_i32_52 dim 1 : vector<8x128xf32>, i32 -> vector<8x128xf32>
    %c64_i32_53 = arith.constant 64 : i32
    %115 = tpu.dynamic_rotate %113 by %c64_i32_53 dim 1 : vector<8x128xf32>, i32 -> vector<8x128xf32>
    %c32_i32_54 = arith.constant 32 : i32
    %116 = tpu.dynamic_rotate %112 by %c32_i32_54 dim 1 : vector<8x128xf32>, i32 -> vector<8x128xf32>
    %117 = arith.mulf %114, %100 : vector<8x128xf32>
    %118 = arith.mulf %112, %115 : vector<8x128xf32>
    %119 = arith.addf %117, %118 : vector<8x128xf32>
    %120 = math.tanh %119 : vector<8x128xf32>
    %121 = arith.mulf %116, %120 : vector<8x128xf32>
    %122 = math.tanh %121 : vector<8x128xf32>
    %c40_55 = arith.constant 40 : index
    %c0_56 = arith.constant 0 : index
    %123 = vector.load %arg12[%c40_55, %c0_56] : memref<64x128xf32, #tpu.memory_space<vmem>>, vector<8x128xf32>
    tpu.vector_store %arg12[%c40_55, %c0_56], %122 {strides = array<i32>} : memref<64x128xf32, #tpu.memory_space<vmem>>, vector<8x128xf32>,
    %c48 = arith.constant 48 : index
    %c0_57 = arith.constant 0 : index
    %124 = vector.load %arg13[%c48, %c0_57] : memref<64x128xf32, #tpu.memory_space<vmem>>, vector<8x128xf32>
    %cst_58 = arith.constant dense<0.000000e+00> : vector<8x128xf32>
    %125 = tpu.matmul %121, %7, %cst_58 {dimension_numbers = #tpu.dot_dimension_numbers<[1], [0], [0], [1], [0, 0, 1, 1], [], []>} : vector<8x128xf32>, vector<128x128xf32>, vector<8x128xf32> -> vector<8x128xf32>
    %126 = arith.addf %124, %125 : vector<8x128xf32>
    %127 = arith.negf %126 : vector<8x128xf32>
    %128 = math.exp %127 : vector<8x128xf32>
    %cst_59 = arith.constant 1.000000e+00 : f32
    %129 = vector.broadcast %cst_59 : f32 to vector<8x128xf32>
    %130 = arith.addf %129, %128 : vector<8x128xf32>
    %131 = arith.divf %129, %130 : vector<8x128xf32>
    %132 = math.tanh %126 : vector<8x128xf32>
    %c96_i32_60 = arith.constant 96 : i32
    %133 = tpu.dynamic_rotate %131 by %c96_i32_60 dim 1 : vector<8x128xf32>, i32 -> vector<8x128xf32>
    %c64_i32_61 = arith.constant 64 : i32
    %134 = tpu.dynamic_rotate %132 by %c64_i32_61 dim 1 : vector<8x128xf32>, i32 -> vector<8x128xf32>
    %c32_i32_62 = arith.constant 32 : i32
    %135 = tpu.dynamic_rotate %131 by %c32_i32_62 dim 1 : vector<8x128xf32>, i32 -> vector<8x128xf32>
    %136 = arith.mulf %133, %119 : vector<8x128xf32>
    %137 = arith.mulf %131, %134 : vector<8x128xf32>
    %138 = arith.addf %136, %137 : vector<8x128xf32>
    %139 = math.tanh %138 : vector<8x128xf32>
    %140 = arith.mulf %135, %139 : vector<8x128xf32>
    %141 = math.tanh %140 : vector<8x128xf32>
    %c48_63 = arith.constant 48 : index
    %c0_64 = arith.constant 0 : index
    %142 = vector.load %arg12[%c48_63, %c0_64] : memref<64x128xf32, #tpu.memory_space<vmem>>, vector<8x128xf32>
    tpu.vector_store %arg12[%c48_63, %c0_64], %141 {strides = array<i32>} : memref<64x128xf32, #tpu.memory_space<vmem>>, vector<8x128xf32>,
    %c56 = arith.constant 56 : index
    %c0_65 = arith.constant 0 : index
    %143 = vector.load %arg13[%c56, %c0_65] : memref<64x128xf32, #tpu.memory_space<vmem>>, vector<8x128xf32>
    %cst_66 = arith.constant dense<0.000000e+00> : vector<8x128xf32>
    %144 = tpu.matmul %140, %7, %cst_66 {dimension_numbers = #tpu.dot_dimension_numbers<[1], [0], [0], [1], [0, 0, 1, 1], [], []>} : vector<8x128xf32>, vector<128x128xf32>, vector<8x128xf32> -> vector<8x128xf32>
    %145 = arith.addf %143, %144 : vector<8x128xf32>
    %146 = arith.negf %145 : vector<8x128xf32>
    %147 = math.exp %146 : vector<8x128xf32>
    %cst_67 = arith.constant 1.000000e+00 : f32
    %148 = vector.broadcast %cst_67 : f32 to vector<8x128xf32>
    %149 = arith.addf %148, %147 : vector<8x128xf32>
    %150 = arith.divf %148, %149 : vector<8x128xf32>
    %151 = math.tanh %145 : vector<8x128xf32>
    %c96_i32_68 = arith.constant 96 : i32
    %152 = tpu.dynamic_rotate %150 by %c96_i32_68 dim 1 : vector<8x128xf32>, i32 -> vector<8x128xf32>
    %c64_i32_69 = arith.constant 64 : i32
    %153 = tpu.dynamic_rotate %151 by %c64_i32_69 dim 1 : vector<8x128xf32>, i32 -> vector<8x128xf32>
    %c32_i32_70 = arith.constant 32 : i32
    %154 = tpu.dynamic_rotate %150 by %c32_i32_70 dim 1 : vector<8x128xf32>, i32 -> vector<8x128xf32>
    %155 = arith.mulf %152, %138 : vector<8x128xf32>
    %156 = arith.mulf %150, %153 : vector<8x128xf32>
    %157 = arith.addf %155, %156 : vector<8x128xf32>
    %158 = math.tanh %157 : vector<8x128xf32>
    %159 = arith.mulf %154, %158 : vector<8x128xf32>
    %160 = math.tanh %159 : vector<8x128xf32>
    %c56_71 = arith.constant 56 : index
    %c0_72 = arith.constant 0 : index
    %161 = vector.load %arg12[%c56_71, %c0_72] : memref<64x128xf32, #tpu.memory_space<vmem>>, vector<8x128xf32>
    tpu.vector_store %arg12[%c56_71, %c0_72], %160 {strides = array<i32>} : memref<64x128xf32, #tpu.memory_space<vmem>>, vector<8x128xf32>,
    %c0_73 = arith.constant 0 : index
    %c0_74 = arith.constant 0 : index
    %162 = vector.load %arg12[%c0_73, %c0_74] : memref<64x128xf32, #tpu.memory_space<vmem>>, vector<64x128xf32>
    %c0_75 = arith.constant 0 : index
    %c0_76 = arith.constant 0 : index
    %163 = vector.load %arg4[%c0_75, %c0_76] : memref<128x128xf32, #tpu.memory_space<vmem>>, vector<128x128xf32>
    %cst_77 = arith.constant dense<0.000000e+00> : vector<64x128xf32>
    %164 = tpu.matmul %162, %163, %cst_77 {dimension_numbers = #tpu.dot_dimension_numbers<[1], [0], [0], [1], [0, 0, 1, 1], [], []>} : vector<64x128xf32>, vector<128x128xf32>, vector<64x128xf32> -> vector<64x128xf32>
    %c0_78 = arith.constant 0 : index
    %c0_79 = arith.constant 0 : index
    %165 = vector.load %arg6[%c0_78, %c0_79] : memref<1x128xf32, #tpu.memory_space<vmem>>, vector<1x128xf32>
    %166 = vector.broadcast %165 : vector<1x128xf32> to vector<64x128xf32>
    %167 = arith.addf %164, %166 : vector<64x128xf32>
    %c0_80 = arith.constant 0 : index
    %c0_81 = arith.constant 0 : index
    %168 = vector.load %arg13[%c0_80, %c0_81] : memref<64x128xf32, #tpu.memory_space<vmem>>, vector<64x128xf32>
    tpu.vector_store %arg13[%c0_80, %c0_81], %167 {strides = array<i32>} : memref<64x128xf32, #tpu.memory_space<vmem>>, vector<64x128xf32>,
    %c0_82 = arith.constant 0 : index
    %c0_83 = arith.constant 0 : index
    %169 = vector.load %arg5[%c0_82, %c0_83] : memref<128x128xf32, #tpu.memory_space<vmem>>, vector<128x128xf32>
    %cst_84 = arith.constant 0.000000e+00 : f32
    %170 = vector.broadcast %cst_84 : f32 to vector<8x128xf32>
    %cst_85 = arith.constant 0.000000e+00 : f32
    %171 = vector.broadcast %cst_85 : f32 to vector<8x128xf32>
    %cst_86 = arith.constant 0.000000e+00 : f32
    %172 = vector.broadcast %cst_86 : f32 to vector<8x128xf32>
    %c0_87 = arith.constant 0 : index
    %c0_88 = arith.constant 0 : index
    %173 = vector.load %arg13[%c0_87, %c0_88] : memref<64x128xf32, #tpu.memory_space<vmem>>, vector<8x128xf32>
    %cst_89 = arith.constant dense<0.000000e+00> : vector<8x128xf32>
    %174 = tpu.matmul %170, %169, %cst_89 {dimension_numbers = #tpu.dot_dimension_numbers<[1], [0], [0], [1], [0, 0, 1, 1], [], []>} : vector<8x128xf32>, vector<128x128xf32>, vector<8x128xf32> -> vector<8x128xf32>
    %175 = arith.addf %173, %174 : vector<8x128xf32>
    %176 = arith.negf %175 : vector<8x128xf32>
    %177 = math.exp %176 : vector<8x128xf32>
    %cst_90 = arith.constant 1.000000e+00 : f32
    %178 = vector.broadcast %cst_90 : f32 to vector<8x128xf32>
    %179 = arith.addf %178, %177 : vector<8x128xf32>
    %180 = arith.divf %178, %179 : vector<8x128xf32>
    %181 = math.tanh %175 : vector<8x128xf32>
    %c112_i32 = arith.constant 112 : i32
    %182 = tpu.dynamic_rotate %180 by %c112_i32 dim 1 : vector<8x128xf32>, i32 -> vector<8x128xf32>
    %c96_i32_91 = arith.constant 96 : i32
    %183 = tpu.dynamic_rotate %181 by %c96_i32_91 dim 1 : vector<8x128xf32>, i32 -> vector<8x128xf32>
    %c80_i32 = arith.constant 80 : i32
    %184 = tpu.dynamic_rotate %180 by %c80_i32 dim 1 : vector<8x128xf32>, i32 -> vector<8x128xf32>
    %185 = arith.mulf %182, %171 : vector<8x128xf32>
    %186 = arith.mulf %180, %183 : vector<8x128xf32>
    %187 = arith.addf %185, %186 : vector<8x128xf32>
    %188 = math.tanh %187 : vector<8x128xf32>
    %189 = arith.mulf %184, %188 : vector<8x128xf32>
    %190 = math.tanh %189 : vector<8x128xf32>
    %191 = arith.addf %172, %190 : vector<8x128xf32>
    %c8_92 = arith.constant 8 : index
    %c0_93 = arith.constant 0 : index
    %192 = vector.load %arg13[%c8_92, %c0_93] : memref<64x128xf32, #tpu.memory_space<vmem>>, vector<8x128xf32>
    %cst_94 = arith.constant dense<0.000000e+00> : vector<8x128xf32>
    %193 = tpu.matmul %189, %169, %cst_94 {dimension_numbers = #tpu.dot_dimension_numbers<[1], [0], [0], [1], [0, 0, 1, 1], [], []>} : vector<8x128xf32>, vector<128x128xf32>, vector<8x128xf32> -> vector<8x128xf32>
    %194 = arith.addf %192, %193 : vector<8x128xf32>
    %195 = arith.negf %194 : vector<8x128xf32>
    %196 = math.exp %195 : vector<8x128xf32>
    %cst_95 = arith.constant 1.000000e+00 : f32
    %197 = vector.broadcast %cst_95 : f32 to vector<8x128xf32>
    %198 = arith.addf %197, %196 : vector<8x128xf32>
    %199 = arith.divf %197, %198 : vector<8x128xf32>
    %200 = math.tanh %194 : vector<8x128xf32>
    %c112_i32_96 = arith.constant 112 : i32
    %201 = tpu.dynamic_rotate %199 by %c112_i32_96 dim 1 : vector<8x128xf32>, i32 -> vector<8x128xf32>
    %c96_i32_97 = arith.constant 96 : i32
    %202 = tpu.dynamic_rotate %200 by %c96_i32_97 dim 1 : vector<8x128xf32>, i32 -> vector<8x128xf32>
    %c80_i32_98 = arith.constant 80 : i32
    %203 = tpu.dynamic_rotate %199 by %c80_i32_98 dim 1 : vector<8x128xf32>, i32 -> vector<8x128xf32>
    %204 = arith.mulf %201, %187 : vector<8x128xf32>
    %205 = arith.mulf %199, %202 : vector<8x128xf32>
    %206 = arith.addf %204, %205 : vector<8x128xf32>
    %207 = math.tanh %206 : vector<8x128xf32>
    %208 = arith.mulf %203, %207 : vector<8x128xf32>
    %209 = math.tanh %208 : vector<8x128xf32>
    %210 = arith.addf %191, %209 : vector<8x128xf32>
    %c16_99 = arith.constant 16 : index
    %c0_100 = arith.constant 0 : index
    %211 = vector.load %arg13[%c16_99, %c0_100] : memref<64x128xf32, #tpu.memory_space<vmem>>, vector<8x128xf32>
    %cst_101 = arith.constant dense<0.000000e+00> : vector<8x128xf32>
    %212 = tpu.matmul %208, %169, %cst_101 {dimension_numbers = #tpu.dot_dimension_numbers<[1], [0], [0], [1], [0, 0, 1, 1], [], []>} : vector<8x128xf32>, vector<128x128xf32>, vector<8x128xf32> -> vector<8x128xf32>
    %213 = arith.addf %211, %212 : vector<8x128xf32>
    %214 = arith.negf %213 : vector<8x128xf32>
    %215 = math.exp %214 : vector<8x128xf32>
    %cst_102 = arith.constant 1.000000e+00 : f32
    %216 = vector.broadcast %cst_102 : f32 to vector<8x128xf32>
    %217 = arith.addf %216, %215 : vector<8x128xf32>
    %218 = arith.divf %216, %217 : vector<8x128xf32>
    %219 = math.tanh %213 : vector<8x128xf32>
    %c112_i32_103 = arith.constant 112 : i32
    %220 = tpu.dynamic_rotate %218 by %c112_i32_103 dim 1 : vector<8x128xf32>, i32 -> vector<8x128xf32>
    %c96_i32_104 = arith.constant 96 : i32
    %221 = tpu.dynamic_rotate %219 by %c96_i32_104 dim 1 : vector<8x128xf32>, i32 -> vector<8x128xf32>
    %c80_i32_105 = arith.constant 80 : i32
    %222 = tpu.dynamic_rotate %218 by %c80_i32_105 dim 1 : vector<8x128xf32>, i32 -> vector<8x128xf32>
    %223 = arith.mulf %220, %206 : vector<8x128xf32>
    %224 = arith.mulf %218, %221 : vector<8x128xf32>
    %225 = arith.addf %223, %224 : vector<8x128xf32>
    %226 = math.tanh %225 : vector<8x128xf32>
    %227 = arith.mulf %222, %226 : vector<8x128xf32>
    %228 = math.tanh %227 : vector<8x128xf32>
    %229 = arith.addf %210, %228 : vector<8x128xf32>
    %c24_106 = arith.constant 24 : index
    %c0_107 = arith.constant 0 : index
    %230 = vector.load %arg13[%c24_106, %c0_107] : memref<64x128xf32, #tpu.memory_space<vmem>>, vector<8x128xf32>
    %cst_108 = arith.constant dense<0.000000e+00> : vector<8x128xf32>
    %231 = tpu.matmul %227, %169, %cst_108 {dimension_numbers = #tpu.dot_dimension_numbers<[1], [0], [0], [1], [0, 0, 1, 1], [], []>} : vector<8x128xf32>, vector<128x128xf32>, vector<8x128xf32> -> vector<8x128xf32>
    %232 = arith.addf %230, %231 : vector<8x128xf32>
    %233 = arith.negf %232 : vector<8x128xf32>
    %234 = math.exp %233 : vector<8x128xf32>
    %cst_109 = arith.constant 1.000000e+00 : f32
    %235 = vector.broadcast %cst_109 : f32 to vector<8x128xf32>
    %236 = arith.addf %235, %234 : vector<8x128xf32>
    %237 = arith.divf %235, %236 : vector<8x128xf32>
    %238 = math.tanh %232 : vector<8x128xf32>
    %c112_i32_110 = arith.constant 112 : i32
    %239 = tpu.dynamic_rotate %237 by %c112_i32_110 dim 1 : vector<8x128xf32>, i32 -> vector<8x128xf32>
    %c96_i32_111 = arith.constant 96 : i32
    %240 = tpu.dynamic_rotate %238 by %c96_i32_111 dim 1 : vector<8x128xf32>, i32 -> vector<8x128xf32>
    %c80_i32_112 = arith.constant 80 : i32
    %241 = tpu.dynamic_rotate %237 by %c80_i32_112 dim 1 : vector<8x128xf32>, i32 -> vector<8x128xf32>
    %242 = arith.mulf %239, %225 : vector<8x128xf32>
    %243 = arith.mulf %237, %240 : vector<8x128xf32>
    %244 = arith.addf %242, %243 : vector<8x128xf32>
    %245 = math.tanh %244 : vector<8x128xf32>
    %246 = arith.mulf %241, %245 : vector<8x128xf32>
    %247 = math.tanh %246 : vector<8x128xf32>
    %248 = arith.addf %229, %247 : vector<8x128xf32>
    %c32_113 = arith.constant 32 : index
    %c0_114 = arith.constant 0 : index
    %249 = vector.load %arg13[%c32_113, %c0_114] : memref<64x128xf32, #tpu.memory_space<vmem>>, vector<8x128xf32>
    %cst_115 = arith.constant dense<0.000000e+00> : vector<8x128xf32>
    %250 = tpu.matmul %246, %169, %cst_115 {dimension_numbers = #tpu.dot_dimension_numbers<[1], [0], [0], [1], [0, 0, 1, 1], [], []>} : vector<8x128xf32>, vector<128x128xf32>, vector<8x128xf32> -> vector<8x128xf32>
    %251 = arith.addf %249, %250 : vector<8x128xf32>
    %252 = arith.negf %251 : vector<8x128xf32>
    %253 = math.exp %252 : vector<8x128xf32>
    %cst_116 = arith.constant 1.000000e+00 : f32
    %254 = vector.broadcast %cst_116 : f32 to vector<8x128xf32>
    %255 = arith.addf %254, %253 : vector<8x128xf32>
    %256 = arith.divf %254, %255 : vector<8x128xf32>
    %257 = math.tanh %251 : vector<8x128xf32>
    %c112_i32_117 = arith.constant 112 : i32
    %258 = tpu.dynamic_rotate %256 by %c112_i32_117 dim 1 : vector<8x128xf32>, i32 -> vector<8x128xf32>
    %c96_i32_118 = arith.constant 96 : i32
    %259 = tpu.dynamic_rotate %257 by %c96_i32_118 dim 1 : vector<8x128xf32>, i32 -> vector<8x128xf32>
    %c80_i32_119 = arith.constant 80 : i32
    %260 = tpu.dynamic_rotate %256 by %c80_i32_119 dim 1 : vector<8x128xf32>, i32 -> vector<8x128xf32>
    %261 = arith.mulf %258, %244 : vector<8x128xf32>
    %262 = arith.mulf %256, %259 : vector<8x128xf32>
    %263 = arith.addf %261, %262 : vector<8x128xf32>
    %264 = math.tanh %263 : vector<8x128xf32>
    %265 = arith.mulf %260, %264 : vector<8x128xf32>
    %266 = math.tanh %265 : vector<8x128xf32>
    %267 = arith.addf %248, %266 : vector<8x128xf32>
    %c40_120 = arith.constant 40 : index
    %c0_121 = arith.constant 0 : index
    %268 = vector.load %arg13[%c40_120, %c0_121] : memref<64x128xf32, #tpu.memory_space<vmem>>, vector<8x128xf32>
    %cst_122 = arith.constant dense<0.000000e+00> : vector<8x128xf32>
    %269 = tpu.matmul %265, %169, %cst_122 {dimension_numbers = #tpu.dot_dimension_numbers<[1], [0], [0], [1], [0, 0, 1, 1], [], []>} : vector<8x128xf32>, vector<128x128xf32>, vector<8x128xf32> -> vector<8x128xf32>
    %270 = arith.addf %268, %269 : vector<8x128xf32>
    %271 = arith.negf %270 : vector<8x128xf32>
    %272 = math.exp %271 : vector<8x128xf32>
    %cst_123 = arith.constant 1.000000e+00 : f32
    %273 = vector.broadcast %cst_123 : f32 to vector<8x128xf32>
    %274 = arith.addf %273, %272 : vector<8x128xf32>
    %275 = arith.divf %273, %274 : vector<8x128xf32>
    %276 = math.tanh %270 : vector<8x128xf32>
    %c112_i32_124 = arith.constant 112 : i32
    %277 = tpu.dynamic_rotate %275 by %c112_i32_124 dim 1 : vector<8x128xf32>, i32 -> vector<8x128xf32>
    %c96_i32_125 = arith.constant 96 : i32
    %278 = tpu.dynamic_rotate %276 by %c96_i32_125 dim 1 : vector<8x128xf32>, i32 -> vector<8x128xf32>
    %c80_i32_126 = arith.constant 80 : i32
    %279 = tpu.dynamic_rotate %275 by %c80_i32_126 dim 1 : vector<8x128xf32>, i32 -> vector<8x128xf32>
    %280 = arith.mulf %277, %263 : vector<8x128xf32>
    %281 = arith.mulf %275, %278 : vector<8x128xf32>
    %282 = arith.addf %280, %281 : vector<8x128xf32>
    %283 = math.tanh %282 : vector<8x128xf32>
    %284 = arith.mulf %279, %283 : vector<8x128xf32>
    %285 = math.tanh %284 : vector<8x128xf32>
    %286 = arith.addf %267, %285 : vector<8x128xf32>
    %c48_127 = arith.constant 48 : index
    %c0_128 = arith.constant 0 : index
    %287 = vector.load %arg13[%c48_127, %c0_128] : memref<64x128xf32, #tpu.memory_space<vmem>>, vector<8x128xf32>
    %cst_129 = arith.constant dense<0.000000e+00> : vector<8x128xf32>
    %288 = tpu.matmul %284, %169, %cst_129 {dimension_numbers = #tpu.dot_dimension_numbers<[1], [0], [0], [1], [0, 0, 1, 1], [], []>} : vector<8x128xf32>, vector<128x128xf32>, vector<8x128xf32> -> vector<8x128xf32>
    %289 = arith.addf %287, %288 : vector<8x128xf32>
    %290 = arith.negf %289 : vector<8x128xf32>
    %291 = math.exp %290 : vector<8x128xf32>
    %cst_130 = arith.constant 1.000000e+00 : f32
    %292 = vector.broadcast %cst_130 : f32 to vector<8x128xf32>
    %293 = arith.addf %292, %291 : vector<8x128xf32>
    %294 = arith.divf %292, %293 : vector<8x128xf32>
    %295 = math.tanh %289 : vector<8x128xf32>
    %c112_i32_131 = arith.constant 112 : i32
    %296 = tpu.dynamic_rotate %294 by %c112_i32_131 dim 1 : vector<8x128xf32>, i32 -> vector<8x128xf32>
    %c96_i32_132 = arith.constant 96 : i32
    %297 = tpu.dynamic_rotate %295 by %c96_i32_132 dim 1 : vector<8x128xf32>, i32 -> vector<8x128xf32>
    %c80_i32_133 = arith.constant 80 : i32
    %298 = tpu.dynamic_rotate %294 by %c80_i32_133 dim 1 : vector<8x128xf32>, i32 -> vector<8x128xf32>
    %299 = arith.mulf %296, %282 : vector<8x128xf32>
    %300 = arith.mulf %294, %297 : vector<8x128xf32>
    %301 = arith.addf %299, %300 : vector<8x128xf32>
    %302 = math.tanh %301 : vector<8x128xf32>
    %303 = arith.mulf %298, %302 : vector<8x128xf32>
    %304 = math.tanh %303 : vector<8x128xf32>
    %305 = arith.addf %286, %304 : vector<8x128xf32>
    %c56_134 = arith.constant 56 : index
    %c0_135 = arith.constant 0 : index
    %306 = vector.load %arg13[%c56_134, %c0_135] : memref<64x128xf32, #tpu.memory_space<vmem>>, vector<8x128xf32>
    %cst_136 = arith.constant dense<0.000000e+00> : vector<8x128xf32>
    %307 = tpu.matmul %303, %169, %cst_136 {dimension_numbers = #tpu.dot_dimension_numbers<[1], [0], [0], [1], [0, 0, 1, 1], [], []>} : vector<8x128xf32>, vector<128x128xf32>, vector<8x128xf32> -> vector<8x128xf32>
    %308 = arith.addf %306, %307 : vector<8x128xf32>
    %309 = arith.negf %308 : vector<8x128xf32>
    %310 = math.exp %309 : vector<8x128xf32>
    %cst_137 = arith.constant 1.000000e+00 : f32
    %311 = vector.broadcast %cst_137 : f32 to vector<8x128xf32>
    %312 = arith.addf %311, %310 : vector<8x128xf32>
    %313 = arith.divf %311, %312 : vector<8x128xf32>
    %314 = math.tanh %308 : vector<8x128xf32>
    %c112_i32_138 = arith.constant 112 : i32
    %315 = tpu.dynamic_rotate %313 by %c112_i32_138 dim 1 : vector<8x128xf32>, i32 -> vector<8x128xf32>
    %c96_i32_139 = arith.constant 96 : i32
    %316 = tpu.dynamic_rotate %314 by %c96_i32_139 dim 1 : vector<8x128xf32>, i32 -> vector<8x128xf32>
    %c80_i32_140 = arith.constant 80 : i32
    %317 = tpu.dynamic_rotate %313 by %c80_i32_140 dim 1 : vector<8x128xf32>, i32 -> vector<8x128xf32>
    %318 = arith.mulf %315, %301 : vector<8x128xf32>
    %319 = arith.mulf %313, %316 : vector<8x128xf32>
    %320 = arith.addf %318, %319 : vector<8x128xf32>
    %321 = math.tanh %320 : vector<8x128xf32>
    %322 = arith.mulf %317, %321 : vector<8x128xf32>
    %323 = math.tanh %322 : vector<8x128xf32>
    %324 = arith.addf %305, %323 : vector<8x128xf32>
    %c0_141 = arith.constant 0 : index
    %c0_142 = arith.constant 0 : index
    %325 = vector.load %arg7[%c0_141, %c0_142] : memref<128x32xf32, #tpu.memory_space<vmem>>, vector<128x32xf32>
    %cst_143 = arith.constant dense<0.000000e+00> : vector<8x32xf32>
    %326 = tpu.matmul %324, %325, %cst_143 {dimension_numbers = #tpu.dot_dimension_numbers<[1], [0], [0], [1], [0, 0, 1, 1], [], []>} : vector<8x128xf32>, vector<128x32xf32>, vector<8x32xf32> -> vector<8x32xf32>
    %c0_144 = arith.constant 0 : index
    %c0_145 = arith.constant 0 : index
    %327 = vector.load %arg8[%c0_144, %c0_145] : memref<1x32xf32, #tpu.memory_space<vmem>>, vector<1x32xf32>
    %328 = vector.broadcast %327 : vector<1x32xf32> to vector<8x32xf32>
    %329 = arith.addf %326, %328 : vector<8x32xf32>
    %cst_146 = arith.constant 0.000000e+00 : f32
    %330 = vector.broadcast %cst_146 : f32 to vector<8x32xf32>
    %331 = arith.maximumf %329, %330 : vector<8x32xf32>
    %c0_147 = arith.constant 0 : index
    %c0_148 = arith.constant 0 : index
    %332 = vector.load %arg9[%c0_147, %c0_148] : memref<32x1xf32, #tpu.memory_space<vmem>>, vector<32x1xf32>
    %cst_149 = arith.constant dense<0.000000e+00> : vector<8x1xf32>
    %333 = tpu.matmul %331, %332, %cst_149 {dimension_numbers = #tpu.dot_dimension_numbers<[1], [0], [0], [1], [0, 0, 1, 1], [], []>} : vector<8x32xf32>, vector<32x1xf32>, vector<8x1xf32> -> vector<8x1xf32>
    %c0_150 = arith.constant 0 : index
    %c0_151 = arith.constant 0 : index
    %334 = vector.load %arg10[%c0_150, %c0_151] : memref<1x1xf32, #tpu.memory_space<vmem>>, vector<1x1xf32>
    %335 = vector.broadcast %334 : vector<1x1xf32> to vector<8x1xf32>
    %336 = arith.addf %333, %335 : vector<8x1xf32>
    %c0_152 = arith.constant 0 : index
    %c0_153 = arith.constant 0 : index
    %337 = vector.load %arg11[%c0_152, %c0_153] : memref<8x1xf32, #tpu.memory_space<vmem>>, vector<8x1xf32>
    tpu.vector_store %arg11[%c0_152, %c0_153], %336 {strides = array<i32>} : memref<8x1xf32, #tpu.memory_space<vmem>>, vector<8x1xf32>,
    return
  }
}

</mosaic_0001>

<llo_original>
// kernel: forward.1
$region0: #{forward.1}
  #allocation0 [shape = 'u32[]', space=smem, size = 0x4, offset = 0x4, fixed_abs, tag = 'smem constant byte address 0x4 - core index']
  #allocation1 [shape = 'u32[144,128]{1,0:T(1,128)}', space=vmem, size = 0x12000, scoped, tag = 'internal scratch']
  #allocation2 [shape = 'f32[64,128]{1,0:T(8,128)}', space=vmem, size = 0x8000, scoped, tag = 'scratch operand']
  #allocation3 [shape = 'f32[64,128]{1,0:T(8,128)}', space=vmem, size = 0x8000, scoped, tag = 'scratch operand']
  #allocation4 [shape = 'f32[1,1]{1,0:T(1,128)S(1)}', space=vmem, size = 0x200, scoped, tag = 'scoped memory for forward.1']
  %s0 = inlined_call_operand.vmem [shape: f32[64,16], index: 0, kind: input, shape index: {}]
  %s1 = inlined_call_operand.vmem [shape: f32[16,128], index: 1, kind: input, shape index: {}]
  %s2 = inlined_call_operand.vmem [shape: f32[128,128], index: 2, kind: input, shape index: {}]
  %s3 = inlined_call_operand.vmem [shape: f32[1,128], index: 3, kind: input, shape index: {}]
  %s4 = inlined_call_operand.vmem [shape: f32[128,128], index: 4, kind: input, shape index: {}]
  %s5 = inlined_call_operand.hbm [shape: f32[128,128], index: 5, kind: input, shape index: {}]
  %s6 = inlined_call_operand.vmem [shape: f32[1,128], index: 6, kind: input, shape index: {}]
  %s7 = inlined_call_operand.vmem [shape: f32[128,32], index: 7, kind: input, shape index: {}]
  %s8 = inlined_call_operand.vmem [shape: f32[1,32], index: 8, kind: input, shape index: {}]
  %s9 = inlined_call_operand.vmem [shape: f32[32,1], index: 9, kind: input, shape index: {}]
  %s10 = inlined_call_operand.<no memory space> [shape: f32[1,1], index: 10, kind: input, shape index: {}]
  %s11 = inlined_call_operand.vmem [shape: f32[8,1], index: 11, kind: output, shape index: {}]
  %s12 = sld [smem:[#allocation0]]
  $region58: #{forward.1} parent=0
    _
  %s14 = ssub.s32 1, %s12
  %s15 = scalar_select 0, %s14, %s12
  %v16 = vstv %s10
  %17 = vst [vmem:[#allocation4] sm:$0x1] %v16
  $region1: #{forward.1} parent=0
    #allocation5 [shape = 'u8[65536]{0}', space=vmem, size = 0x10000, scoped, tag = 'input window, operand 5, single buffered']
    #allocation6 [shape = 's32[1]{0}', space=sflag, size = 0x4, scoped, tag = 'scoped memory for forward.1']
    %18 = vsyncpa [#allocation6], 0
    // Predicated region
    $region2: #{forward.1} parent=1 // pred_check
      _
    $region3: #{forward.1} parent=1 // pred_check_branch
      %20 = sbr.rel (0) target = $region5
    $region4: #{forward.1} parent=1 // pred_region
      _
    $region5: #{forward.1} parent=1 // pred_fallthru
      _
    // Predicated region
    $region6: #{forward.1} parent=1 // pred_check
      _
    $region7: #{forward.1} parent=1 // pred_check_branch
      %22 = sbr.rel (0) target = $region9
    $region8: #{forward.1} parent=1 // pred_region
      _
    $region9: #{forward.1} parent=1 // pred_fallthru
      _
    // Predicated region
    $region10: #{forward.1} parent=1 // pred_check
      _
    $region11: #{forward.1} parent=1 // pred_check_branch
      %24 = sbr.rel (0) target = $region13
    $region12: #{forward.1} parent=1 // pred_region
      _
    $region13: #{forward.1} parent=1 // pred_fallthru
      _
    // Predicated region
    $region14: #{forward.1} parent=1 // pred_check
      _
    $region15: #{forward.1} parent=1 // pred_check_branch
      %26 = sbr.rel (0) target = $region17
    $region16: #{forward.1} parent=1 // pred_region
      _
    $region17: #{forward.1} parent=1 // pred_fallthru
      _
    // Predicated region
    $region18: #{forward.1} parent=1 // pred_check
      _
    $region19: #{forward.1} parent=1 // pred_check_branch
      %28 = sbr.rel (0) target = $region21
    $region20: #{forward.1} parent=1 // pred_region
      _
    $region21: #{forward.1} parent=1 // pred_fallthru
      _
    // Predicated region
    $region22: #{forward.1} parent=1 // pred_check
      _
    $region23: #{forward.1} parent=1 // pred_check_branch
      %30 = sbr.rel (0) target = $region25
    $region24: #{forward.1} parent=1 // pred_region
      %s32 = ssub.s32 2048, 2048
      %33 = vsyncadd [#allocation6], %s32
      %s34 = sshll.u32 [#allocation5], 4
      %s35 = int_to_ptr.vmem [resolvable:$true] %s34
      %40 = dma.hbm_to_vmem [thread:$0]  %s5, 2048, %s35, [#allocation6], 128, 128, 8
    $region25: #{forward.1} parent=1 // pred_fallthru
      _
    // Predicated region
    $region26: #{forward.1} parent=1 // pred_check
      _
    $region27: #{forward.1} parent=1 // pred_check_branch
      %42 = sbr.rel (0) target = $region29
    $region28: #{forward.1} parent=1 // pred_region
      _
    $region29: #{forward.1} parent=1 // pred_fallthru
      _
    // Predicated region
    $region30: #{forward.1} parent=1 // pred_check
      _
    $region31: #{forward.1} parent=1 // pred_check_branch
      %44 = sbr.rel (0) target = $region33
    $region32: #{forward.1} parent=1 // pred_region
      _
    $region33: #{forward.1} parent=1 // pred_fallthru
      _
    // Predicated region
    $region34: #{forward.1} parent=1 // pred_check
      _
    $region35: #{forward.1} parent=1 // pred_check_branch
      %46 = sbr.rel (0) target = $region37
    $region36: #{forward.1} parent=1 // pred_region
      _
    $region37: #{forward.1} parent=1 // pred_fallthru
      _
    // Predicated region
    $region38: #{forward.1} parent=1 // pred_check
      _
    $region39: #{forward.1} parent=1 // pred_check_branch
      %48 = sbr.rel (0) target = $region41
    $region40: #{forward.1} parent=1 // pred_region
      _
    $region41: #{forward.1} parent=1 // pred_fallthru
      _
    // Predicated region
    $region42: #{forward.1} parent=1 // pred_check
      _
    $region43: #{forward.1} parent=1 // pred_check_branch
      %50 = sbr.rel (0) target = $region45
    $region44: #{forward.1} parent=1 // pred_region
      _
    $region45: #{forward.1} parent=1 // pred_fallthru
      _
    // Predicated region
    $region46: #{forward.1} parent=1 // pred_check
      _
    $region47: #{forward.1} parent=1 // pred_check_branch
      %52 = sbr.rel (0) target = $region49
    $region48: #{forward.1} parent=1 // pred_region
      %53 = dma.done [#allocation6], 2048
    $region49: #{forward.1} parent=1 // pred_fallthru
      _
    %v54 = vld [vmem:[%s0] sm:$0xff]
    %v55 = vld [vmem:[%s0 + $0x8] sm:$0xff]
    %v56 = vld [vmem:[%s0 + $0x10] sm:$0xff]
    %v57 = vld [vmem:[%s0 + $0x18] sm:$0xff]
    %v58 = vld [vmem:[%s0 + $0x20] sm:$0xff]
    %v59 = vld [vmem:[%s0 + $0x28] sm:$0xff]
    %v60 = vld [vmem:[%s0 + $0x30] sm:$0xff]
    %v61 = vld [vmem:[%s0 + $0x38] sm:$0xff]
    %v62 = vld [vmem:[%s1] sm:$0xff]
    %v63 = vld [vmem:[%s1 + $0x8] sm:$0xff]
    %v64 = vld [vmem:[%s3] sm:$0x1]
    %v66 = vlaneseq
    %v67 = vshrl.u32 %v66, 7
    %v68 = vsub.s32 0, %v67
    %v69 = vrot.slane %v64, %v68
    %vm71 = vcmask 130048
    %v73 = vsel %vm71, %v54, 0
    %v76 = vsel %vm71, %v55, 0
    %v79 = vsel %vm71, %v56, 0
    %v82 = vsel %vm71, %v57, 0
    %v85 = vsel %vm71, %v58, 0
    %v88 = vsel %vm71, %v59, 0
    %v91 = vsel %vm71, %v60, 0
    %v94 = vsel %vm71, %v61, 0
    %96 = vmatprep.subr.mxu0 0.0
    %97 = vmatpush1.msra.mxu0 %v62
    %98 = vmatprep.subr.mxu0 0.0
    %99 = vmatpush1.msra.mxu0 %v63
    %100 = vmatprep.subr.mxu0 0.0
    %101 = vmatpush1.msra.mxu0 0.0
    %102 = vmatprep.subr.mxu0 0.0
    %103 = vmatpush1.msra.mxu0 0.0
    %104 = vmatprep.subr.mxu0 0.0
    %105 = vmatpush1.msra.mxu0 0.0
    %106 = vmatprep.subr.mxu0 0.0
    %107 = vmatpush1.msra.mxu0 0.0
    %108 = vmatprep.subr.mxu0 0.0
    %109 = vmatpush1.msra.mxu0 0.0
    %110 = vmatprep.subr.mxu0 0.0
    %111 = vmatpush1.msra.mxu0 0.0
    %112 = vmatprep.subr.mxu0 0.0
    %113 = vmatpush1.msra.mxu0 0.0
    %114 = vmatprep.subr.mxu0 0.0
    %115 = vmatpush1.msra.mxu0 0.0
    %116 = vmatprep.subr.mxu0 0.0
    %117 = vmatpush1.msra.mxu0 0.0
    %118 = vmatprep.subr.mxu0 0.0
    %119 = vmatpush1.msra.mxu0 0.0
    %120 = vmatprep.subr.mxu0 0.0
    %121 = vmatpush1.msra.mxu0 0.0
    %122 = vmatprep.subr.mxu0 0.0
    %123 = vmatpush1.msra.mxu0 0.0
    %124 = vmatprep.subr.mxu0 0.0
    %125 = vmatpush1.msra.mxu0 0.0
    %126 = vmatprep.subr.mxu0 0.0
    %127 = vmatpush1.msra.mxu0 0.0
    %128 = vmatprep.subr.mxu0 0.0
    %129 = vmatpush1.msra.mxu0 0.0
    %130 = vmatprep.subr.mxu0 0.0
    %131 = vmatpush1.msra.mxu0 0.0
    %132 = vmatprep.subr.mxu0 0.0
    %133 = vmatpush1.msra.mxu0 0.0
    %134 = vmatprep.subr.mxu0 0.0
    %135 = vmatpush1.msra.mxu0 0.0
    %136 = vmatprep.subr.mxu0 0.0
    %137 = vmatpush1.msra.mxu0 0.0
    %138 = vmatprep.subr.mxu0 0.0
    %139 = vmatpush1.msra.mxu0 0.0
    %140 = vmatprep.subr.mxu0 0.0
    %141 = vmatpush1.msra.mxu0 0.0
    %142 = vmatprep.subr.mxu0 0.0
    %143 = vmatpush1.msra.mxu0 0.0
    %144 = vmatprep.subr.mxu0 0.0
    %145 = vmatpush1.msra.mxu0 0.0
    %146 = vmatprep.subr.mxu0 0.0
    %147 = vmatpush1.msra.mxu0 0.0
    %148 = vmatprep.subr.mxu0 0.0
    %149 = vmatpush1.msra.mxu0 0.0
    %150 = vmatprep.subr.mxu0 0.0
    %151 = vmatpush1.msra.mxu0 0.0
    %152 = vmatprep.subr.mxu0 0.0
    %153 = vmatpush1.msra.mxu0 0.0
    %154 = vmatprep.subr.mxu0 0.0
    %155 = vmatpush1.msra.mxu0 0.0
    %156 = vmatprep.subr.mxu0 0.0
    %157 = vmatpush1.msra.mxu0 0.0
    %158 = vmatprep.subr.mxu0 0.0
    %159 = vmatpush1.msra.mxu0 0.0
    %160 = vmatprep.mubr.f32.mxu0 0.0
    %161 = vmatmul.mubr.f32.gmra.mrb[0].mxu0 %v73
    %v162 = vpop.f32.mrb[0].mxu0
    %v163 = vadd.f32 %v69, %v162
    %v164 = vpop.f32.mrb[0].mxu0
    %165 = vmatprep.mubr.f32.mxu0 0.0
    %166 = vmatmul.mubr.f32.gmra.mrb[0].mxu0 %v76
    %v167 = vpop.f32.mrb[0].mxu0
    %v168 = vadd.f32 %v69, %v167
    %v169 = vpop.f32.mrb[0].mxu0
    %170 = vmatprep.mubr.f32.mxu0 0.0
    %171 = vmatmul.mubr.f32.gmra.mrb[0].mxu0 %v79
    %v172 = vpop.f32.mrb[0].mxu0
    %v173 = vadd.f32 %v69, %v172
    %v174 = vpop.f32.mrb[0].mxu0
    %175 = vmatprep.mubr.f32.mxu0 0.0
    %176 = vmatmul.mubr.f32.gmra.mrb[0].mxu0 %v82
    %v177 = vpop.f32.mrb[0].mxu0
    %v178 = vadd.f32 %v69, %v177
    %v179 = vpop.f32.mrb[0].mxu0
    %180 = vmatprep.mubr.f32.mxu0 0.0
    %181 = vmatmul.mubr.f32.gmra.mrb[0].mxu0 %v85
    %v182 = vpop.f32.mrb[0].mxu0
    %v183 = vadd.f32 %v69, %v182
    %v184 = vpop.f32.mrb[0].mxu0
    %185 = vmatprep.mubr.f32.mxu0 0.0
    %186 = vmatmul.mubr.f32.gmra.mrb[0].mxu0 %v88
    %v187 = vpop.f32.mrb[0].mxu0
    %v188 = vadd.f32 %v69, %v187
    %v189 = vpop.f32.mrb[0].mxu0
    %190 = vmatprep.mubr.f32.mxu0 0.0
    %191 = vmatmul.mubr.f32.gmra.mrb[0].mxu0 %v91
    %v192 = vpop.f32.mrb[0].mxu0
    %v193 = vadd.f32 %v69, %v192
    %v194 = vpop.f32.mrb[0].mxu0
    %195 = vmatprep.mubr.f32.mxu0 0.0
    %196 = vmatmul.mubr.f32.gmra.mrb[0].mxu0 %v94
    %v197 = vpop.f32.mrb[0].mxu0
    %v198 = vadd.f32 %v69, %v197
    %v199 = vpop.f32.mrb[0].mxu0
    %200 = vdwg.mxu0
    %201 = vst [vmem:[#allocation3] sm:$0xff] %v163
    %202 = vst [vmem:[#allocation3 + $0x8] sm:$0xff] %v168
    %203 = vst [vmem:[#allocation3 + $0x10] sm:$0xff] %v173
    %204 = vst [vmem:[#allocation3 + $0x18] sm:$0xff] %v178
    %205 = vst [vmem:[#allocation3 + $0x20] sm:$0xff] %v183
    %206 = vst [vmem:[#allocation3 + $0x28] sm:$0xff] %v188
    %207 = vst [vmem:[#allocation3 + $0x30] sm:$0xff] %v193
    %208 = vst [vmem:[#allocation3 + $0x38] sm:$0xff] %v198
    %v209 = vld [vmem:[%s2] sm:$0xff]
    %v210 = vld [vmem:[%s2 + $0x8] sm:$0xff]
    %v211 = vld [vmem:[%s2 + $0x10] sm:$0xff]
    %v212 = vld [vmem:[%s2 + $0x18] sm:$0xff]
    %v213 = vld [vmem:[%s2 + $0x20] sm:$0xff]
    %v214 = vld [vmem:[%s2 + $0x28] sm:$0xff]
    %v215 = vld [vmem:[%s2 + $0x30] sm:$0xff]
    %v216 = vld [vmem:[%s2 + $0x38] sm:$0xff]
    %v217 = vld [vmem:[%s2 + $0x40] sm:$0xff]
    %v218 = vld [vmem:[%s2 + $0x48] sm:$0xff]
    %v219 = vld [vmem:[%s2 + $0x50] sm:$0xff]
    %v220 = vld [vmem:[%s2 + $0x58] sm:$0xff]
    %v221 = vld [vmem:[%s2 + $0x60] sm:$0xff]
    %v222 = vld [vmem:[%s2 + $0x68] sm:$0xff]
    %v223 = vld [vmem:[%s2 + $0x70] sm:$0xff]
    %v224 = vld [vmem:[%s2 + $0x78] sm:$0xff]
    %v225 = vld [vmem:[#allocation3] sm:$0xff]
    %226 = vmatprep.subr.mxu0 0.0
    %227 = vmatpush1.msra.mxu0 %v209
    %228 = vmatprep.subr.mxu0 0.0
    %229 = vmatpush1.msra.mxu0 %v210
    %230 = vmatprep.subr.mxu0 0.0
    %231 = vmatpush1.msra.mxu0 %v211
    %232 = vmatprep.subr.mxu0 0.0
    %233 = vmatpush1.msra.mxu0 %v212
    %234 = vmatprep.subr.mxu0 0.0
    %235 = vmatpush1.msra.mxu0 %v213
    %236 = vmatprep.subr.mxu0 0.0
    %237 = vmatpush1.msra.mxu0 %v214
    %238 = vmatprep.subr.mxu0 0.0
    %239 = vmatpush1.msra.mxu0 %v215
    %240 = vmatprep.subr.mxu0 0.0
    %241 = vmatpush1.msra.mxu0 %v216
    %242 = vmatprep.subr.mxu0 0.0
    %243 = vmatpush1.msra.mxu0 %v217
    %244 = vmatprep.subr.mxu0 0.0
    %245 = vmatpush1.msra.mxu0 %v218
    %246 = vmatprep.subr.mxu0 0.0
    %247 = vmatpush1.msra.mxu0 %v219
    %248 = vmatprep.subr.mxu0 0.0
    %249 = vmatpush1.msra.mxu0 %v220
    %250 = vmatprep.subr.mxu0 0.0
    %251 = vmatpush1.msra.mxu0 %v221
    %252 = vmatprep.subr.mxu0 0.0
    %253 = vmatpush1.msra.mxu0 %v222
    %254 = vmatprep.subr.mxu0 0.0
    %255 = vmatpush1.msra.mxu0 %v223
    %256 = vmatprep.subr.mxu0 0.0
    %257 = vmatpush1.msra.mxu0 %v224
    %258 = vmatprep.subr.mxu0 0.0
    %259 = vmatpush1.msra.mxu0 0.0
    %260 = vmatprep.subr.mxu0 0.0
    %261 = vmatpush1.msra.mxu0 0.0
    %262 = vmatprep.subr.mxu0 0.0
    %263 = vmatpush1.msra.mxu0 0.0
    %264 = vmatprep.subr.mxu0 0.0
    %265 = vmatpush1.msra.mxu0 0.0
    %266 = vmatprep.subr.mxu0 0.0
    %267 = vmatpush1.msra.mxu0 0.0
    %268 = vmatprep.subr.mxu0 0.0
    %269 = vmatpush1.msra.mxu0 0.0
    %270 = vmatprep.subr.mxu0 0.0
    %271 = vmatpush1.msra.mxu0 0.0
    %272 = vmatprep.subr.mxu0 0.0
    %273 = vmatpush1.msra.mxu0 0.0
    %274 = vmatprep.subr.mxu0 0.0
    %275 = vmatpush1.msra.mxu0 0.0
    %276 = vmatprep.subr.mxu0 0.0
    %277 = vmatpush1.msra.mxu0 0.0
    %278 = vmatprep.subr.mxu0 0.0
    %279 = vmatpush1.msra.mxu0 0.0
    %280 = vmatprep.subr.mxu0 0.0
    %281 = vmatpush1.msra.mxu0 0.0
    %282 = vmatprep.subr.mxu0 0.0
    %283 = vmatpush1.msra.mxu0 0.0
    %284 = vmatprep.subr.mxu0 0.0
    %285 = vmatpush1.msra.mxu0 0.0
    %286 = vmatprep.subr.mxu0 0.0
    %287 = vmatpush1.msra.mxu0 0.0
    %288 = vmatprep.subr.mxu0 0.0
    %289 = vmatpush1.msra.mxu0 0.0
    %290 = vmatprep.mubr.f32.mxu0 0.0
    %291 = vmatmul.mubr.f32.gmra.mrb[0].mxu0 0.0
    %v292 = vpop.f32.mrb[0].mxu0
    %v293 = vadd.f32 0.0, %v292
    %v294 = vpop.f32.mrb[0].mxu0
    %295 = vdwg.mxu0
    %v296 = vadd.f32 %v225, %v293
    %v297 = vxor.u32 %v296, 2147483648
    %v298 = vmul.f32 %v297, 1.442695
    %v299 = vpow.pop %v298
    %v300 = vadd.f32 %v299, 1.0
    %v301 = vrcp.pop %v300
    %v302 = vmul.f32 1.0, %v301
    %v303 = vtanh.pop %v296
    %304 = vrot.lane.b32.xlu0 %v302, 96
    %v305 = vpop.permute.xlu0 %304
    %306 = vrot.lane.b32.xlu0 %v303, 64
    %v307 = vpop.permute.xlu0 %306
    %308 = vrot.lane.b32.xlu0 %v302, 32
    %v309 = vpop.permute.xlu0 %308
    %v310 = vmul.f32 %v305, 0.0
    %v311 = vmul.f32 %v302, %v307
    %v312 = vadd.f32 %v310, %v311
    %v313 = vtanh.pop %v312
    %v314 = vmul.f32 %v309, %v313
    %v315 = vtanh.pop %v314
    %316 = vst [vmem:[#allocation2] sm:$0xff] %v315
    %v317 = vld [vmem:[#allocation3 + $0x8] sm:$0xff]
    %318 = vmatprep.subr.mxu0 0.0
    %319 = vmatpush1.msra.mxu0 %v209
    %320 = vmatprep.subr.mxu0 0.0
    %321 = vmatpush1.msra.mxu0 %v210
    %322 = vmatprep.subr.mxu0 0.0
    %323 = vmatpush1.msra.mxu0 %v211
    %324 = vmatprep.subr.mxu0 0.0
    %325 = vmatpush1.msra.mxu0 %v212
    %326 = vmatprep.subr.mxu0 0.0
    %327 = vmatpush1.msra.mxu0 %v213
    %328 = vmatprep.subr.mxu0 0.0
    %329 = vmatpush1.msra.mxu0 %v214
    %330 = vmatprep.subr.mxu0 0.0
    %331 = vmatpush1.msra.mxu0 %v215
    %332 = vmatprep.subr.mxu0 0.0
    %333 = vmatpush1.msra.mxu0 %v216
    %334 = vmatprep.subr.mxu0 0.0
    %335 = vmatpush1.msra.mxu0 %v217
    %336 = vmatprep.subr.mxu0 0.0
    %337 = vmatpush1.msra.mxu0 %v218
    %338 = vmatprep.subr.mxu0 0.0
    %339 = vmatpush1.msra.mxu0 %v219
    %340 = vmatprep.subr.mxu0 0.0
    %341 = vmatpush1.msra.mxu0 %v220
    %342 = vmatprep.subr.mxu0 0.0
    %343 = vmatpush1.msra.mxu0 %v221
    %344 = vmatprep.subr.mxu0 0.0
    %345 = vmatpush1.msra.mxu0 %v222
    %346 = vmatprep.subr.mxu0 0.0
    %347 = vmatpush1.msra.mxu0 %v223
    %348 = vmatprep.subr.mxu0 0.0
    %349 = vmatpush1.msra.mxu0 %v224
    %350 = vmatprep.subr.mxu0 0.0
    %351 = vmatpush1.msra.mxu0 0.0
    %352 = vmatprep.subr.mxu0 0.0
    %353 = vmatpush1.msra.mxu0 0.0
    %354 = vmatprep.subr.mxu0 0.0
    %355 = vmatpush1.msra.mxu0 0.0
    %356 = vmatprep.subr.mxu0 0.0
    %357 = vmatpush1.msra.mxu0 0.0
    %358 = vmatprep.subr.mxu0 0.0
    %359 = vmatpush1.msra.mxu0 0.0
    %360 = vmatprep.subr.mxu0 0.0
    %361 = vmatpush1.msra.mxu0 0.0
    %362 = vmatprep.subr.mxu0 0.0
    %363 = vmatpush1.msra.mxu0 0.0
    %364 = vmatprep.subr.mxu0 0.0
    %365 = vmatpush1.msra.mxu0 0.0
    %366 = vmatprep.subr.mxu0 0.0
    %367 = vmatpush1.msra.mxu0 0.0
    %368 = vmatprep.subr.mxu0 0.0
    %369 = vmatpush1.msra.mxu0 0.0
    %370 = vmatprep.subr.mxu0 0.0
    %371 = vmatpush1.msra.mxu0 0.0
    %372 = vmatprep.subr.mxu0 0.0
    %373 = vmatpush1.msra.mxu0 0.0
    %374 = vmatprep.subr.mxu0 0.0
    %375 = vmatpush1.msra.mxu0 0.0
    %376 = vmatprep.subr.mxu0 0.0
    %377 = vmatpush1.msra.mxu0 0.0
    %378 = vmatprep.subr.mxu0 0.0
    %379 = vmatpush1.msra.mxu0 0.0
    %380 = vmatprep.subr.mxu0 0.0
    %381 = vmatpush1.msra.mxu0 0.0
    %382 = vmatprep.mubr.f32.mxu0 0.0
    %383 = vmatmul.mubr.f32.gmra.mrb[0].mxu0 %v314
    %v384 = vpop.f32.mrb[0].mxu0
    %v385 = vadd.f32 0.0, %v384
    %v386 = vpop.f32.mrb[0].mxu0
    %387 = vdwg.mxu0
    %v388 = vadd.f32 %v317, %v385
    %v389 = vxor.u32 %v388, 2147483648
    %v390 = vmul.f32 %v389, 1.442695
    %v391 = vpow.pop %v390
    %v392 = vadd.f32 %v391, 1.0
    %v393 = vrcp.pop %v392
    %v394 = vmul.f32 1.0, %v393
    %v395 = vtanh.pop %v388
    %396 = vrot.lane.b32.xlu0 %v394, 96
    %v397 = vpop.permute.xlu0 %396
    %398 = vrot.lane.b32.xlu0 %v395, 64
    %v399 = vpop.permute.xlu0 %398
    %400 = vrot.lane.b32.xlu0 %v394, 32
    %v401 = vpop.permute.xlu0 %400
    %v402 = vmul.f32 %v397, %v312
    %v403 = vmul.f32 %v394, %v399
    %v404 = vadd.f32 %v402, %v403
    %v405 = vtanh.pop %v404
    %v406 = vmul.f32 %v401, %v405
    %v407 = vtanh.pop %v406
    %408 = vst [vmem:[#allocation2 + $0x8] sm:$0xff] %v407
    %v409 = vld [vmem:[#allocation3 + $0x10] sm:$0xff]
    %410 = vmatprep.subr.mxu0 0.0
    %411 = vmatpush1.msra.mxu0 %v209
    %412 = vmatprep.subr.mxu0 0.0
    %413 = vmatpush1.msra.mxu0 %v210
    %414 = vmatprep.subr.mxu0 0.0
    %415 = vmatpush1.msra.mxu0 %v211
    %416 = vmatprep.subr.mxu0 0.0
    %417 = vmatpush1.msra.mxu0 %v212
    %418 = vmatprep.subr.mxu0 0.0
    %419 = vmatpush1.msra.mxu0 %v213
    %420 = vmatprep.subr.mxu0 0.0
    %421 = vmatpush1.msra.mxu0 %v214
    %422 = vmatprep.subr.mxu0 0.0
    %423 = vmatpush1.msra.mxu0 %v215
    %424 = vmatprep.subr.mxu0 0.0
    %425 = vmatpush1.msra.mxu0 %v216
    %426 = vmatprep.subr.mxu0 0.0
    %427 = vmatpush1.msra.mxu0 %v217
    %428 = vmatprep.subr.mxu0 0.0
    %429 = vmatpush1.msra.mxu0 %v218
    %430 = vmatprep.subr.mxu0 0.0
    %431 = vmatpush1.msra.mxu0 %v219
    %432 = vmatprep.subr.mxu0 0.0
    %433 = vmatpush1.msra.mxu0 %v220
    %434 = vmatprep.subr.mxu0 0.0
    %435 = vmatpush1.msra.mxu0 %v221
    %436 = vmatprep.subr.mxu0 0.0
    %437 = vmatpush1.msra.mxu0 %v222
    %438 = vmatprep.subr.mxu0 0.0
    %439 = vmatpush1.msra.mxu0 %v223
    %440 = vmatprep.subr.mxu0 0.0
    %441 = vmatpush1.msra.mxu0 %v224
    %442 = vmatprep.subr.mxu0 0.0
    %443 = vmatpush1.msra.mxu0 0.0
    %444 = vmatprep.subr.mxu0 0.0
    %445 = vmatpush1.msra.mxu0 0.0
    %446 = vmatprep.subr.mxu0 0.0
    %447 = vmatpush1.msra.mxu0 0.0
    %448 = vmatprep.subr.mxu0 0.0
    %449 = vmatpush1.msra.mxu0 0.0
    %450 = vmatprep.subr.mxu0 0.0
    %451 = vmatpush1.msra.mxu0 0.0
    %452 = vmatprep.subr.mxu0 0.0
    %453 = vmatpush1.msra.mxu0 0.0
    %454 = vmatprep.subr.mxu0 0.0
    %455 = vmatpush1.msra.mxu0 0.0
    %456 = vmatprep.subr.mxu0 0.0
    %457 = vmatpush1.msra.mxu0 0.0
    %458 = vmatprep.subr.mxu0 0.0
    %459 = vmatpush1.msra.mxu0 0.0
    %460 = vmatprep.subr.mxu0 0.0
    %461 = vmatpush1.msra.mxu0 0.0
    %462 = vmatprep.subr.mxu0 0.0
    %463 = vmatpush1.msra.mxu0 0.0
    %464 = vmatprep.subr.mxu0 0.0
    %465 = vmatpush1.msra.mxu0 0.0
    %466 = vmatprep.subr.mxu0 0.0
    %467 = vmatpush1.msra.mxu0 0.0
    %468 = vmatprep.subr.mxu0 0.0
    %469 = vmatpush1.msra.mxu0 0.0
    %470 = vmatprep.subr.mxu0 0.0
    %471 = vmatpush1.msra.mxu0 0.0
    %472 = vmatprep.subr.mxu0 0.0
    %473 = vmatpush1.msra.mxu0 0.0
    %474 = vmatprep.mubr.f32.mxu0 0.0
    %475 = vmatmul.mubr.f32.gmra.mrb[0].mxu0 %v406
    %v476 = vpop.f32.mrb[0].mxu0
    %v477 = vadd.f32 0.0, %v476
    %v478 = vpop.f32.mrb[0].mxu0
    %479 = vdwg.mxu0
    %v480 = vadd.f32 %v409, %v477
    %v481 = vxor.u32 %v480, 2147483648
    %v482 = vmul.f32 %v481, 1.442695
    %v483 = vpow.pop %v482
    %v484 = vadd.f32 %v483, 1.0
    %v485 = vrcp.pop %v484
    %v486 = vmul.f32 1.0, %v485
    %v487 = vtanh.pop %v480
    %488 = vrot.lane.b32.xlu0 %v486, 96
    %v489 = vpop.permute.xlu0 %488
    %490 = vrot.lane.b32.xlu0 %v487, 64
    %v491 = vpop.permute.xlu0 %490
    %492 = vrot.lane.b32.xlu0 %v486, 32
    %v493 = vpop.permute.xlu0 %492
    %v494 = vmul.f32 %v489, %v404
    %v495 = vmul.f32 %v486, %v491
    %v496 = vadd.f32 %v494, %v495
    %v497 = vtanh.pop %v496
    %v498 = vmul.f32 %v493, %v497
    %v499 = vtanh.pop %v498
    %500 = vst [vmem:[#allocation2 + $0x10] sm:$0xff] %v499
    %v501 = vld [vmem:[#allocation3 + $0x18] sm:$0xff]
    %502 = vmatprep.subr.mxu0 0.0
    %503 = vmatpush1.msra.mxu0 %v209
    %504 = vmatprep.subr.mxu0 0.0
    %505 = vmatpush1.msra.mxu0 %v210
    %506 = vmatprep.subr.mxu0 0.0
    %507 = vmatpush1.msra.mxu0 %v211
    %508 = vmatprep.subr.mxu0 0.0
    %509 = vmatpush1.msra.mxu0 %v212
    %510 = vmatprep.subr.mxu0 0.0
    %511 = vmatpush1.msra.mxu0 %v213
    %512 = vmatprep.subr.mxu0 0.0
    %513 = vmatpush1.msra.mxu0 %v214
    %514 = vmatprep.subr.mxu0 0.0
    %515 = vmatpush1.msra.mxu0 %v215
    %516 = vmatprep.subr.mxu0 0.0
    %517 = vmatpush1.msra.mxu0 %v216
    %518 = vmatprep.subr.mxu0 0.0
    %519 = vmatpush1.msra.mxu0 %v217
    %520 = vmatprep.subr.mxu0 0.0
    %521 = vmatpush1.msra.mxu0 %v218
    %522 = vmatprep.subr.mxu0 0.0
    %523 = vmatpush1.msra.mxu0 %v219
    %524 = vmatprep.subr.mxu0 0.0
    %525 = vmatpush1.msra.mxu0 %v220
    %526 = vmatprep.subr.mxu0 0.0
    %527 = vmatpush1.msra.mxu0 %v221
    %528 = vmatprep.subr.mxu0 0.0
    %529 = vmatpush1.msra.mxu0 %v222
    %530 = vmatprep.subr.mxu0 0.0
    %531 = vmatpush1.msra.mxu0 %v223
    %532 = vmatprep.subr.mxu0 0.0
    %533 = vmatpush1.msra.mxu0 %v224
    %534 = vmatprep.subr.mxu0 0.0
    %535 = vmatpush1.msra.mxu0 0.0
    %536 = vmatprep.subr.mxu0 0.0
    %537 = vmatpush1.msra.mxu0 0.0
    %538 = vmatprep.subr.mxu0 0.0
    %539 = vmatpush1.msra.mxu0 0.0
    %540 = vmatprep.subr.mxu0 0.0
    %541 = vmatpush1.msra.mxu0 0.0
    %542 = vmatprep.subr.mxu0 0.0
    %543 = vmatpush1.msra.mxu0 0.0
    %544 = vmatprep.subr.mxu0 0.0
    %545 = vmatpush1.msra.mxu0 0.0
    %546 = vmatprep.subr.mxu0 0.0
    %547 = vmatpush1.msra.mxu0 0.0
    %548 = vmatprep.subr.mxu0 0.0
    %549 = vmatpush1.msra.mxu0 0.0
    %550 = vmatprep.subr.mxu0 0.0
    %551 = vmatpush1.msra.mxu0 0.0
    %552 = vmatprep.subr.mxu0 0.0
    %553 = vmatpush1.msra.mxu0 0.0
    %554 = vmatprep.subr.mxu0 0.0
    %555 = vmatpush1.msra.mxu0 0.0
    %556 = vmatprep.subr.mxu0 0.0
    %557 = vmatpush1.msra.mxu0 0.0
    %558 = vmatprep.subr.mxu0 0.0
    %559 = vmatpush1.msra.mxu0 0.0
    %560 = vmatprep.subr.mxu0 0.0
    %561 = vmatpush1.msra.mxu0 0.0
    %562 = vmatprep.subr.mxu0 0.0
    %563 = vmatpush1.msra.mxu0 0.0
    %564 = vmatprep.subr.mxu0 0.0
    %565 = vmatpush1.msra.mxu0 0.0
    %566 = vmatprep.mubr.f32.mxu0 0.0
    %567 = vmatmul.mubr.f32.gmra.mrb[0].mxu0 %v498
    %v568 = vpop.f32.mrb[0].mxu0
    %v569 = vadd.f32 0.0, %v568
    %v570 = vpop.f32.mrb[0].mxu0
    %571 = vdwg.mxu0
    %v572 = vadd.f32 %v501, %v569
    %v573 = vxor.u32 %v572, 2147483648
    %v574 = vmul.f32 %v573, 1.442695
    %v575 = vpow.pop %v574
    %v576 = vadd.f32 %v575, 1.0
    %v577 = vrcp.pop %v576
    %v578 = vmul.f32 1.0, %v577
    %v579 = vtanh.pop %v572
    %580 = vrot.lane.b32.xlu0 %v578, 96
    %v581 = vpop.permute.xlu0 %580
    %582 = vrot.lane.b32.xlu0 %v579, 64
    %v583 = vpop.permute.xlu0 %582
    %584 = vrot.lane.b32.xlu0 %v578, 32
    %v585 = vpop.permute.xlu0 %584
    %v586 = vmul.f32 %v581, %v496
    %v587 = vmul.f32 %v578, %v583
    %v588 = vadd.f32 %v586, %v587
    %v589 = vtanh.pop %v588
    %v590 = vmul.f32 %v585, %v589
    %v591 = vtanh.pop %v590
    %592 = vst [vmem:[#allocation2 + $0x18] sm:$0xff] %v591
    %v593 = vld [vmem:[#allocation3 + $0x20] sm:$0xff]
    %594 = vmatprep.subr.mxu0 0.0
    %595 = vmatpush1.msra.mxu0 %v209
    %596 = vmatprep.subr.mxu0 0.0
    %597 = vmatpush1.msra.mxu0 %v210
    %598 = vmatprep.subr.mxu0 0.0
    %599 = vmatpush1.msra.mxu0 %v211
    %600 = vmatprep.subr.mxu0 0.0
    %601 = vmatpush1.msra.mxu0 %v212
    %602 = vmatprep.subr.mxu0 0.0
    %603 = vmatpush1.msra.mxu0 %v213
    %604 = vmatprep.subr.mxu0 0.0
    %605 = vmatpush1.msra.mxu0 %v214
    %606 = vmatprep.subr.mxu0 0.0
    %607 = vmatpush1.msra.mxu0 %v215
    %608 = vmatprep.subr.mxu0 0.0
    %609 = vmatpush1.msra.mxu0 %v216
    %610 = vmatprep.subr.mxu0 0.0
    %611 = vmatpush1.msra.mxu0 %v217
    %612 = vmatprep.subr.mxu0 0.0
    %613 = vmatpush1.msra.mxu0 %v218
    %614 = vmatprep.subr.mxu0 0.0
    %615 = vmatpush1.msra.mxu0 %v219
    %616 = vmatprep.subr.mxu0 0.0
    %617 = vmatpush1.msra.mxu0 %v220
    %618 = vmatprep.subr.mxu0 0.0
    %619 = vmatpush1.msra.mxu0 %v221
    %620 = vmatprep.subr.mxu0 0.0
    %621 = vmatpush1.msra.mxu0 %v222
    %622 = vmatprep.subr.mxu0 0.0
    %623 = vmatpush1.msra.mxu0 %v223
    %624 = vmatprep.subr.mxu0 0.0
    %625 = vmatpush1.msra.mxu0 %v224
    %626 = vmatprep.subr.mxu0 0.0
    %627 = vmatpush1.msra.mxu0 0.0
    %628 = vmatprep.subr.mxu0 0.0
    %629 = vmatpush1.msra.mxu0 0.0
    %630 = vmatprep.subr.mxu0 0.0
    %631 = vmatpush1.msra.mxu0 0.0
    %632 = vmatprep.subr.mxu0 0.0
    %633 = vmatpush1.msra.mxu0 0.0
    %634 = vmatprep.subr.mxu0 0.0
    %635 = vmatpush1.msra.mxu0 0.0
    %636 = vmatprep.subr.mxu0 0.0
    %637 = vmatpush1.msra.mxu0 0.0
    %638 = vmatprep.subr.mxu0 0.0
    %639 = vmatpush1.msra.mxu0 0.0
    %640 = vmatprep.subr.mxu0 0.0
    %641 = vmatpush1.msra.mxu0 0.0
    %642 = vmatprep.subr.mxu0 0.0
    %643 = vmatpush1.msra.mxu0 0.0
    %644 = vmatprep.subr.mxu0 0.0
    %645 = vmatpush1.msra.mxu0 0.0
    %646 = vmatprep.subr.mxu0 0.0
    %647 = vmatpush1.msra.mxu0 0.0
    %648 = vmatprep.subr.mxu0 0.0
    %649 = vmatpush1.msra.mxu0 0.0
    %650 = vmatprep.subr.mxu0 0.0
    %651 = vmatpush1.msra.mxu0 0.0
    %652 = vmatprep.subr.mxu0 0.0
    %653 = vmatpush1.msra.mxu0 0.0
    %654 = vmatprep.subr.mxu0 0.0
    %655 = vmatpush1.msra.mxu0 0.0
    %656 = vmatprep.subr.mxu0 0.0
    %657 = vmatpush1.msra.mxu0 0.0
    %658 = vmatprep.mubr.f32.mxu0 0.0
    %659 = vmatmul.mubr.f32.gmra.mrb[0].mxu0 %v590
    %v660 = vpop.f32.mrb[0].mxu0
    %v661 = vadd.f32 0.0, %v660
    %v662 = vpop.f32.mrb[0].mxu0
    %663 = vdwg.mxu0
    %v664 = vadd.f32 %v593, %v661
    %v665 = vxor.u32 %v664, 2147483648
    %v666 = vmul.f32 %v665, 1.442695
    %v667 = vpow.pop %v666
    %v668 = vadd.f32 %v667, 1.0
    %v669 = vrcp.pop %v668
    %v670 = vmul.f32 1.0, %v669
    %v671 = vtanh.pop %v664
    %672 = vrot.lane.b32.xlu0 %v670, 96
    %v673 = vpop.permute.xlu0 %672
    %674 = vrot.lane.b32.xlu0 %v671, 64
    %v675 = vpop.permute.xlu0 %674
    %676 = vrot.lane.b32.xlu0 %v670, 32
    %v677 = vpop.permute.xlu0 %676
    %v678 = vmul.f32 %v673, %v588
    %v679 = vmul.f32 %v670, %v675
    %v680 = vadd.f32 %v678, %v679
    %v681 = vtanh.pop %v680
    %v682 = vmul.f32 %v677, %v681
    %v683 = vtanh.pop %v682
    %684 = vst [vmem:[#allocation2 + $0x20] sm:$0xff] %v683
    %v685 = vld [vmem:[#allocation3 + $0x28] sm:$0xff]
    %686 = vmatprep.subr.mxu0 0.0
    %687 = vmatpush1.msra.mxu0 %v209
    %688 = vmatprep.subr.mxu0 0.0
    %689 = vmatpush1.msra.mxu0 %v210
    %690 = vmatprep.subr.mxu0 0.0
    %691 = vmatpush1.msra.mxu0 %v211
    %692 = vmatprep.subr.mxu0 0.0
    %693 = vmatpush1.msra.mxu0 %v212
    %694 = vmatprep.subr.mxu0 0.0
    %695 = vmatpush1.msra.mxu0 %v213
    %696 = vmatprep.subr.mxu0 0.0
    %697 = vmatpush1.msra.mxu0 %v214
    %698 = vmatprep.subr.mxu0 0.0
    %699 = vmatpush1.msra.mxu0 %v215
    %700 = vmatprep.subr.mxu0 0.0
    %701 = vmatpush1.msra.mxu0 %v216
    %702 = vmatprep.subr.mxu0 0.0
    %703 = vmatpush1.msra.mxu0 %v217
    %704 = vmatprep.subr.mxu0 0.0
    %705 = vmatpush1.msra.mxu0 %v218
    %706 = vmatprep.subr.mxu0 0.0
    %707 = vmatpush1.msra.mxu0 %v219
    %708 = vmatprep.subr.mxu0 0.0
    %709 = vmatpush1.msra.mxu0 %v220
    %710 = vmatprep.subr.mxu0 0.0
    %711 = vmatpush1.msra.mxu0 %v221
    %712 = vmatprep.subr.mxu0 0.0
    %713 = vmatpush1.msra.mxu0 %v222
    %714 = vmatprep.subr.mxu0 0.0
    %715 = vmatpush1.msra.mxu0 %v223
    %716 = vmatprep.subr.mxu0 0.0
    %717 = vmatpush1.msra.mxu0 %v224
    %718 = vmatprep.subr.mxu0 0.0
    %719 = vmatpush1.msra.mxu0 0.0
    %720 = vmatprep.subr.mxu0 0.0
    %721 = vmatpush1.msra.mxu0 0.0
    %722 = vmatprep.subr.mxu0 0.0
    %723 = vmatpush1.msra.mxu0 0.0
    %724 = vmatprep.subr.mxu0 0.0
    %725 = vmatpush1.msra.mxu0 0.0
    %726 = vmatprep.subr.mxu0 0.0
    %727 = vmatpush1.msra.mxu0 0.0
    %728 = vmatprep.subr.mxu0 0.0
    %729 = vmatpush1.msra.mxu0 0.0
    %730 = vmatprep.subr.mxu0 0.0
    %731 = vmatpush1.msra.mxu0 0.0
    %732 = vmatprep.subr.mxu0 0.0
    %733 = vmatpush1.msra.mxu0 0.0
    %734 = vmatprep.subr.mxu0 0.0
    %735 = vmatpush1.msra.mxu0 0.0
    %736 = vmatprep.subr.mxu0 0.0
    %737 = vmatpush1.msra.mxu0 0.0
    %738 = vmatprep.subr.mxu0 0.0
    %739 = vmatpush1.msra.mxu0 0.0
    %740 = vmatprep.subr.mxu0 0.0
    %741 = vmatpush1.msra.mxu0 0.0
    %742 = vmatprep.subr.mxu0 0.0
    %743 = vmatpush1.msra.mxu0 0.0
    %744 = vmatprep.subr.mxu0 0.0
    %745 = vmatpush1.msra.mxu0 0.0
    %746 = vmatprep.subr.mxu0 0.0
    %747 = vmatpush1.msra.mxu0 0.0
    %748 = vmatprep.subr.mxu0 0.0
    %749 = vmatpush1.msra.mxu0 0.0
    %750 = vmatprep.mubr.f32.mxu0 0.0
    %751 = vmatmul.mubr.f32.gmra.mrb[0].mxu0 %v682
    %v752 = vpop.f32.mrb[0].mxu0
    %v753 = vadd.f32 0.0, %v752
    %v754 = vpop.f32.mrb[0].mxu0
    %755 = vdwg.mxu0
    %v756 = vadd.f32 %v685, %v753
    %v757 = vxor.u32 %v756, 2147483648
    %v758 = vmul.f32 %v757, 1.442695
    %v759 = vpow.pop %v758
    %v760 = vadd.f32 %v759, 1.0
    %v761 = vrcp.pop %v760
    %v762 = vmul.f32 1.0, %v761
    %v763 = vtanh.pop %v756
    %764 = vrot.lane.b32.xlu0 %v762, 96
    %v765 = vpop.permute.xlu0 %764
    %766 = vrot.lane.b32.xlu0 %v763, 64
    %v767 = vpop.permute.xlu0 %766
    %768 = vrot.lane.b32.xlu0 %v762, 32
    %v769 = vpop.permute.xlu0 %768
    %v770 = vmul.f32 %v765, %v680
    %v771 = vmul.f32 %v762, %v767
    %v772 = vadd.f32 %v770, %v771
    %v773 = vtanh.pop %v772
    %v774 = vmul.f32 %v769, %v773
    %v775 = vtanh.pop %v774
    %776 = vst [vmem:[#allocation2 + $0x28] sm:$0xff] %v775
    %v777 = vld [vmem:[#allocation3 + $0x30] sm:$0xff]
    %778 = vmatprep.subr.mxu0 0.0
    %779 = vmatpush1.msra.mxu0 %v209
    %780 = vmatprep.subr.mxu0 0.0
    %781 = vmatpush1.msra.mxu0 %v210
    %782 = vmatprep.subr.mxu0 0.0
    %783 = vmatpush1.msra.mxu0 %v211
    %784 = vmatprep.subr.mxu0 0.0
    %785 = vmatpush1.msra.mxu0 %v212
    %786 = vmatprep.subr.mxu0 0.0
    %787 = vmatpush1.msra.mxu0 %v213
    %788 = vmatprep.subr.mxu0 0.0
    %789 = vmatpush1.msra.mxu0 %v214
    %790 = vmatprep.subr.mxu0 0.0
    %791 = vmatpush1.msra.mxu0 %v215
    %792 = vmatprep.subr.mxu0 0.0
    %793 = vmatpush1.msra.mxu0 %v216
    %794 = vmatprep.subr.mxu0 0.0
    %795 = vmatpush1.msra.mxu0 %v217
    %796 = vmatprep.subr.mxu0 0.0
    %797 = vmatpush1.msra.mxu0 %v218
    %798 = vmatprep.subr.mxu0 0.0
    %799 = vmatpush1.msra.mxu0 %v219
    %800 = vmatprep.subr.mxu0 0.0
    %801 = vmatpush1.msra.mxu0 %v220
    %802 = vmatprep.subr.mxu0 0.0
    %803 = vmatpush1.msra.mxu0 %v221
    %804 = vmatprep.subr.mxu0 0.0
    %805 = vmatpush1.msra.mxu0 %v222
    %806 = vmatprep.subr.mxu0 0.0
    %807 = vmatpush1.msra.mxu0 %v223
    %808 = vmatprep.subr.mxu0 0.0
    %809 = vmatpush1.msra.mxu0 %v224
    %810 = vmatprep.subr.mxu0 0.0
    %811 = vmatpush1.msra.mxu0 0.0
    %812 = vmatprep.subr.mxu0 0.0
    %813 = vmatpush1.msra.mxu0 0.0
    %814 = vmatprep.subr.mxu0 0.0
    %815 = vmatpush1.msra.mxu0 0.0
    %816 = vmatprep.subr.mxu0 0.0
    %817 = vmatpush1.msra.mxu0 0.0
    %818 = vmatprep.subr.mxu0 0.0
    %819 = vmatpush1.msra.mxu0 0.0
    %820 = vmatprep.subr.mxu0 0.0
    %821 = vmatpush1.msra.mxu0 0.0
    %822 = vmatprep.subr.mxu0 0.0
    %823 = vmatpush1.msra.mxu0 0.0
    %824 = vmatprep.subr.mxu0 0.0
    %825 = vmatpush1.msra.mxu0 0.0
    %826 = vmatprep.subr.mxu0 0.0
    %827 = vmatpush1.msra.mxu0 0.0
    %828 = vmatprep.subr.mxu0 0.0
    %829 = vmatpush1.msra.mxu0 0.0
    %830 = vmatprep.subr.mxu0 0.0
    %831 = vmatpush1.msra.mxu0 0.0
    %832 = vmatprep.subr.mxu0 0.0
    %833 = vmatpush1.msra.mxu0 0.0
    %834 = vmatprep.subr.mxu0 0.0
    %835 = vmatpush1.msra.mxu0 0.0
    %836 = vmatprep.subr.mxu0 0.0
    %837 = vmatpush1.msra.mxu0 0.0
    %838 = vmatprep.subr.mxu0 0.0
    %839 = vmatpush1.msra.mxu0 0.0
    %840 = vmatprep.subr.mxu0 0.0
    %841 = vmatpush1.msra.mxu0 0.0
    %842 = vmatprep.mubr.f32.mxu0 0.0
    %843 = vmatmul.mubr.f32.gmra.mrb[0].mxu0 %v774
    %v844 = vpop.f32.mrb[0].mxu0
    %v845 = vadd.f32 0.0, %v844
    %v846 = vpop.f32.mrb[0].mxu0
    %847 = vdwg.mxu0
    %v848 = vadd.f32 %v777, %v845
    %v849 = vxor.u32 %v848, 2147483648
    %v850 = vmul.f32 %v849, 1.442695
    %v851 = vpow.pop %v850
    %v852 = vadd.f32 %v851, 1.0
    %v853 = vrcp.pop %v852
    %v854 = vmul.f32 1.0, %v853
    %v855 = vtanh.pop %v848
    %856 = vrot.lane.b32.xlu0 %v854, 96
    %v857 = vpop.permute.xlu0 %856
    %858 = vrot.lane.b32.xlu0 %v855, 64
    %v859 = vpop.permute.xlu0 %858
    %860 = vrot.lane.b32.xlu0 %v854, 32
    %v861 = vpop.permute.xlu0 %860
    %v862 = vmul.f32 %v857, %v772
    %v863 = vmul.f32 %v854, %v859
    %v864 = vadd.f32 %v862, %v863
    %v865 = vtanh.pop %v864
    %v866 = vmul.f32 %v861, %v865
    %v867 = vtanh.pop %v866
    %868 = vst [vmem:[#allocation2 + $0x30] sm:$0xff] %v867
    %v869 = vld [vmem:[#allocation3 + $0x38] sm:$0xff]
    %870 = vmatprep.subr.mxu0 0.0
    %871 = vmatpush1.msra.mxu0 %v209
    %872 = vmatprep.subr.mxu0 0.0
    %873 = vmatpush1.msra.mxu0 %v210
    %874 = vmatprep.subr.mxu0 0.0
    %875 = vmatpush1.msra.mxu0 %v211
    %876 = vmatprep.subr.mxu0 0.0
    %877 = vmatpush1.msra.mxu0 %v212
    %878 = vmatprep.subr.mxu0 0.0
    %879 = vmatpush1.msra.mxu0 %v213
    %880 = vmatprep.subr.mxu0 0.0
    %881 = vmatpush1.msra.mxu0 %v214
    %882 = vmatprep.subr.mxu0 0.0
    %883 = vmatpush1.msra.mxu0 %v215
    %884 = vmatprep.subr.mxu0 0.0
    %885 = vmatpush1.msra.mxu0 %v216
    %886 = vmatprep.subr.mxu0 0.0
    %887 = vmatpush1.msra.mxu0 %v217
    %888 = vmatprep.subr.mxu0 0.0
    %889 = vmatpush1.msra.mxu0 %v218
    %890 = vmatprep.subr.mxu0 0.0
    %891 = vmatpush1.msra.mxu0 %v219
    %892 = vmatprep.subr.mxu0 0.0
    %893 = vmatpush1.msra.mxu0 %v220
    %894 = vmatprep.subr.mxu0 0.0
    %895 = vmatpush1.msra.mxu0 %v221
    %896 = vmatprep.subr.mxu0 0.0
    %897 = vmatpush1.msra.mxu0 %v222
    %898 = vmatprep.subr.mxu0 0.0
    %899 = vmatpush1.msra.mxu0 %v223
    %900 = vmatprep.subr.mxu0 0.0
    %901 = vmatpush1.msra.mxu0 %v224
    %902 = vmatprep.subr.mxu0 0.0
    %903 = vmatpush1.msra.mxu0 0.0
    %904 = vmatprep.subr.mxu0 0.0
    %905 = vmatpush1.msra.mxu0 0.0
    %906 = vmatprep.subr.mxu0 0.0
    %907 = vmatpush1.msra.mxu0 0.0
    %908 = vmatprep.subr.mxu0 0.0
    %909 = vmatpush1.msra.mxu0 0.0
    %910 = vmatprep.subr.mxu0 0.0
    %911 = vmatpush1.msra.mxu0 0.0
    %912 = vmatprep.subr.mxu0 0.0
    %913 = vmatpush1.msra.mxu0 0.0
    %914 = vmatprep.subr.mxu0 0.0
    %915 = vmatpush1.msra.mxu0 0.0
    %916 = vmatprep.subr.mxu0 0.0
    %917 = vmatpush1.msra.mxu0 0.0
    %918 = vmatprep.subr.mxu0 0.0
    %919 = vmatpush1.msra.mxu0 0.0
    %920 = vmatprep.subr.mxu0 0.0
    %921 = vmatpush1.msra.mxu0 0.0
    %922 = vmatprep.subr.mxu0 0.0
    %923 = vmatpush1.msra.mxu0 0.0
    %924 = vmatprep.subr.mxu0 0.0
    %925 = vmatpush1.msra.mxu0 0.0
    %926 = vmatprep.subr.mxu0 0.0
    %927 = vmatpush1.msra.mxu0 0.0
    %928 = vmatprep.subr.mxu0 0.0
    %929 = vmatpush1.msra.mxu0 0.0
    %930 = vmatprep.subr.mxu0 0.0
    %931 = vmatpush1.msra.mxu0 0.0
    %932 = vmatprep.subr.mxu0 0.0
    %933 = vmatpush1.msra.mxu0 0.0
    %934 = vmatprep.mubr.f32.mxu0 0.0
    %935 = vmatmul.mubr.f32.gmra.mrb[0].mxu0 %v866
    %v936 = vpop.f32.mrb[0].mxu0
    %v937 = vadd.f32 0.0, %v936
    %v938 = vpop.f32.mrb[0].mxu0
    %939 = vdwg.mxu0
    %v940 = vadd.f32 %v869, %v937
    %v941 = vxor.u32 %v940, 2147483648
    %v942 = vmul.f32 %v941, 1.442695
    %v943 = vpow.pop %v942
    %v944 = vadd.f32 %v943, 1.0
    %v945 = vrcp.pop %v944
    %v946 = vmul.f32 1.0, %v945
    %v947 = vtanh.pop %v940
    %948 = vrot.lane.b32.xlu0 %v946, 96
    %v949 = vpop.permute.xlu0 %948
    %950 = vrot.lane.b32.xlu0 %v947, 64
    %v951 = vpop.permute.xlu0 %950
    %952 = vrot.lane.b32.xlu0 %v946, 32
    %v953 = vpop.permute.xlu0 %952
    %v954 = vmul.f32 %v949, %v864
    %v955 = vmul.f32 %v946, %v951
    %v956 = vadd.f32 %v954, %v955
    %v957 = vtanh.pop %v956
    %v958 = vmul.f32 %v953, %v957
    %v959 = vtanh.pop %v958
    %960 = vst [vmem:[#allocation2 + $0x38] sm:$0xff] %v959
    %v961 = vld [vmem:[#allocation2] sm:$0xff]
    %v962 = vld [vmem:[#allocation2 + $0x8] sm:$0xff]
    %v963 = vld [vmem:[#allocation2 + $0x10] sm:$0xff]
    %v964 = vld [vmem:[#allocation2 + $0x18] sm:$0xff]
    %v965 = vld [vmem:[#allocation2 + $0x20] sm:$0xff]
    %v966 = vld [vmem:[#allocation2 + $0x28] sm:$0xff]
    %v967 = vld [vmem:[#allocation2 + $0x30] sm:$0xff]
    %v968 = vld [vmem:[#allocation2 + $0x38] sm:$0xff]
    %v969 = vld [vmem:[%s4] sm:$0xff]
    %v970 = vld [vmem:[%s4 + $0x8] sm:$0xff]
    %v971 = vld [vmem:[%s4 + $0x10] sm:$0xff]
    %v972 = vld [vmem:[%s4 + $0x18] sm:$0xff]
    %v973 = vld [vmem:[%s4 + $0x20] sm:$0xff]
    %v974 = vld [vmem:[%s4 + $0x28] sm:$0xff]
    %v975 = vld [vmem:[%s4 + $0x30] sm:$0xff]
    %v976 = vld [vmem:[%s4 + $0x38] sm:$0xff]
    %v977 = vld [vmem:[%s4 + $0x40] sm:$0xff]
    %v978 = vld [vmem:[%s4 + $0x48] sm:$0xff]
    %v979 = vld [vmem:[%s4 + $0x50] sm:$0xff]
    %v980 = vld [vmem:[%s4 + $0x58] sm:$0xff]
    %v981 = vld [vmem:[%s4 + $0x60] sm:$0xff]
    %v982 = vld [vmem:[%s4 + $0x68] sm:$0xff]
    %v983 = vld [vmem:[%s4 + $0x70] sm:$0xff]
    %v984 = vld [vmem:[%s4 + $0x78] sm:$0xff]
    %v985 = vld [vmem:[%s6] sm:$0x1]
    %v987 = vlaneseq
    %v988 = vshrl.u32 %v987, 7
    %v989 = vsub.s32 0, %v988
    %v990 = vrot.slane %v985, %v989
    %992 = vmatprep.subr.mxu0 0.0
    %993 = vmatpush1.msra.mxu0 %v969
    %994 = vmatprep.subr.mxu0 0.0
    %995 = vmatpush1.msra.mxu0 %v970
    %996 = vmatprep.subr.mxu0 0.0
    %997 = vmatpush1.msra.mxu0 %v971
    %998 = vmatprep.subr.mxu0 0.0
    %999 = vmatpush1.msra.mxu0 %v972
    %1000 = vmatprep.subr.mxu0 0.0
    %1001 = vmatpush1.msra.mxu0 %v973
    %1002 = vmatprep.subr.mxu0 0.0
    %1003 = vmatpush1.msra.mxu0 %v974
    %1004 = vmatprep.subr.mxu0 0.0
    %1005 = vmatpush1.msra.mxu0 %v975
    %1006 = vmatprep.subr.mxu0 0.0
    %1007 = vmatpush1.msra.mxu0 %v976
    %1008 = vmatprep.subr.mxu0 0.0
    %1009 = vmatpush1.msra.mxu0 %v977
    %1010 = vmatprep.subr.mxu0 0.0
    %1011 = vmatpush1.msra.mxu0 %v978
    %1012 = vmatprep.subr.mxu0 0.0
    %1013 = vmatpush1.msra.mxu0 %v979
    %1014 = vmatprep.subr.mxu0 0.0
    %1015 = vmatpush1.msra.mxu0 %v980
    %1016 = vmatprep.subr.mxu0 0.0
    %1017 = vmatpush1.msra.mxu0 %v981
    %1018 = vmatprep.subr.mxu0 0.0
    %1019 = vmatpush1.msra.mxu0 %v982
    %1020 = vmatprep.subr.mxu0 0.0
    %1021 = vmatpush1.msra.mxu0 %v983
    %1022 = vmatprep.subr.mxu0 0.0
    %1023 = vmatpush1.msra.mxu0 %v984
    %1024 = vmatprep.subr.mxu0 0.0
    %1025 = vmatpush1.msra.mxu0 0.0
    %1026 = vmatprep.subr.mxu0 0.0
    %1027 = vmatpush1.msra.mxu0 0.0
    %1028 = vmatprep.subr.mxu0 0.0
    %1029 = vmatpush1.msra.mxu0 0.0
    %1030 = vmatprep.subr.mxu0 0.0
    %1031 = vmatpush1.msra.mxu0 0.0
    %1032 = vmatprep.subr.mxu0 0.0
    %1033 = vmatpush1.msra.mxu0 0.0
    %1034 = vmatprep.subr.mxu0 0.0
    %1035 = vmatpush1.msra.mxu0 0.0
    %1036 = vmatprep.subr.mxu0 0.0
    %1037 = vmatpush1.msra.mxu0 0.0
    %1038 = vmatprep.subr.mxu0 0.0
    %1039 = vmatpush1.msra.mxu0 0.0
    %1040 = vmatprep.subr.mxu0 0.0
    %1041 = vmatpush1.msra.mxu0 0.0
    %1042 = vmatprep.subr.mxu0 0.0
    %1043 = vmatpush1.msra.mxu0 0.0
    %1044 = vmatprep.subr.mxu0 0.0
    %1045 = vmatpush1.msra.mxu0 0.0
    %1046 = vmatprep.subr.mxu0 0.0
    %1047 = vmatpush1.msra.mxu0 0.0
    %1048 = vmatprep.subr.mxu0 0.0
    %1049 = vmatpush1.msra.mxu0 0.0
    %1050 = vmatprep.subr.mxu0 0.0
    %1051 = vmatpush1.msra.mxu0 0.0
    %1052 = vmatprep.subr.mxu0 0.0
    %1053 = vmatpush1.msra.mxu0 0.0
    %1054 = vmatprep.subr.mxu0 0.0
    %1055 = vmatpush1.msra.mxu0 0.0
    %1056 = vmatprep.mubr.f32.mxu0 0.0
    %1057 = vmatmul.mubr.f32.gmra.mrb[0].mxu0 %v961
    %v1058 = vpop.f32.mrb[0].mxu0
    %v1059 = vadd.f32 %v990, %v1058
    %v1060 = vpop.f32.mrb[0].mxu0
    %1061 = vmatprep.mubr.f32.mxu0 0.0
    %1062 = vmatmul.mubr.f32.gmra.mrb[0].mxu0 %v962
    %v1063 = vpop.f32.mrb[0].mxu0
    %v1064 = vadd.f32 %v990, %v1063
    %v1065 = vpop.f32.mrb[0].mxu0
    %1066 = vmatprep.mubr.f32.mxu0 0.0
    %1067 = vmatmul.mubr.f32.gmra.mrb[0].mxu0 %v963
    %v1068 = vpop.f32.mrb[0].mxu0
    %v1069 = vadd.f32 %v990, %v1068
    %v1070 = vpop.f32.mrb[0].mxu0
    %1071 = vmatprep.mubr.f32.mxu0 0.0
    %1072 = vmatmul.mubr.f32.gmra.mrb[0].mxu0 %v964
    %v1073 = vpop.f32.mrb[0].mxu0
    %v1074 = vadd.f32 %v990, %v1073
    %v1075 = vpop.f32.mrb[0].mxu0
    %1076 = vmatprep.mubr.f32.mxu0 0.0
    %1077 = vmatmul.mubr.f32.gmra.mrb[0].mxu0 %v965
    %v1078 = vpop.f32.mrb[0].mxu0
    %v1079 = vadd.f32 %v990, %v1078
    %v1080 = vpop.f32.mrb[0].mxu0
    %1081 = vmatprep.mubr.f32.mxu0 0.0
    %1082 = vmatmul.mubr.f32.gmra.mrb[0].mxu0 %v966
    %v1083 = vpop.f32.mrb[0].mxu0
    %v1084 = vadd.f32 %v990, %v1083
    %v1085 = vpop.f32.mrb[0].mxu0
    %1086 = vmatprep.mubr.f32.mxu0 0.0
    %1087 = vmatmul.mubr.f32.gmra.mrb[0].mxu0 %v967
    %v1088 = vpop.f32.mrb[0].mxu0
    %v1089 = vadd.f32 %v990, %v1088
    %v1090 = vpop.f32.mrb[0].mxu0
    %1091 = vmatprep.mubr.f32.mxu0 0.0
    %1092 = vmatmul.mubr.f32.gmra.mrb[0].mxu0 %v968
    %v1093 = vpop.f32.mrb[0].mxu0
    %v1094 = vadd.f32 %v990, %v1093
    %v1095 = vpop.f32.mrb[0].mxu0
    %1096 = vdwg.mxu0
    %1097 = vst [vmem:[#allocation3] sm:$0xff] %v1059
    %1098 = vst [vmem:[#allocation3 + $0x8] sm:$0xff] %v1064
    %1099 = vst [vmem:[#allocation3 + $0x10] sm:$0xff] %v1069
    %1100 = vst [vmem:[#allocation3 + $0x18] sm:$0xff] %v1074
    %1101 = vst [vmem:[#allocation3 + $0x20] sm:$0xff] %v1079
    %1102 = vst [vmem:[#allocation3 + $0x28] sm:$0xff] %v1084
    %1103 = vst [vmem:[#allocation3 + $0x30] sm:$0xff] %v1089
    %1104 = vst [vmem:[#allocation3 + $0x38] sm:$0xff] %v1094
    %v1105 = vld [vmem:[#allocation5] sm:$0xff]
    %v1106 = vld [vmem:[#allocation5 + $0x8] sm:$0xff]
    %v1107 = vld [vmem:[#allocation5 + $0x10] sm:$0xff]
    %v1108 = vld [vmem:[#allocation5 + $0x18] sm:$0xff]
    %v1109 = vld [vmem:[#allocation5 + $0x20] sm:$0xff]
    %v1110 = vld [vmem:[#allocation5 + $0x28] sm:$0xff]
    %v1111 = vld [vmem:[#allocation5 + $0x30] sm:$0xff]
    %v1112 = vld [vmem:[#allocation5 + $0x38] sm:$0xff]
    %v1113 = vld [vmem:[#allocation5 + $0x40] sm:$0xff]
    %v1114 = vld [vmem:[#allocation5 + $0x48] sm:$0xff]
    %v1115 = vld [vmem:[#allocation5 + $0x50] sm:$0xff]
    %v1116 = vld [vmem:[#allocation5 + $0x58] sm:$0xff]
    %v1117 = vld [vmem:[#allocation5 + $0x60] sm:$0xff]
    %v1118 = vld [vmem:[#allocation5 + $0x68] sm:$0xff]
    %v1119 = vld [vmem:[#allocation5 + $0x70] sm:$0xff]
    %v1120 = vld [vmem:[#allocation5 + $0x78] sm:$0xff]
    %v1121 = vld [vmem:[#allocation3] sm:$0xff]
    %1122 = vmatprep.subr.mxu0 0.0
    %1123 = vmatpush1.msra.mxu0 %v1105
    %1124 = vmatprep.subr.mxu0 0.0
    %1125 = vmatpush1.msra.mxu0 %v1106
    %1126 = vmatprep.subr.mxu0 0.0
    %1127 = vmatpush1.msra.mxu0 %v1107
    %1128 = vmatprep.subr.mxu0 0.0
    %1129 = vmatpush1.msra.mxu0 %v1108
    %1130 = vmatprep.subr.mxu0 0.0
    %1131 = vmatpush1.msra.mxu0 %v1109
    %1132 = vmatprep.subr.mxu0 0.0
    %1133 = vmatpush1.msra.mxu0 %v1110
    %1134 = vmatprep.subr.mxu0 0.0
    %1135 = vmatpush1.msra.mxu0 %v1111
    %1136 = vmatprep.subr.mxu0 0.0
    %1137 = vmatpush1.msra.mxu0 %v1112
    %1138 = vmatprep.subr.mxu0 0.0
    %1139 = vmatpush1.msra.mxu0 %v1113
    %1140 = vmatprep.subr.mxu0 0.0
    %1141 = vmatpush1.msra.mxu0 %v1114
    %1142 = vmatprep.subr.mxu0 0.0
    %1143 = vmatpush1.msra.mxu0 %v1115
    %1144 = vmatprep.subr.mxu0 0.0
    %1145 = vmatpush1.msra.mxu0 %v1116
    %1146 = vmatprep.subr.mxu0 0.0
    %1147 = vmatpush1.msra.mxu0 %v1117
    %1148 = vmatprep.subr.mxu0 0.0
    %1149 = vmatpush1.msra.mxu0 %v1118
    %1150 = vmatprep.subr.mxu0 0.0
    %1151 = vmatpush1.msra.mxu0 %v1119
    %1152 = vmatprep.subr.mxu0 0.0
    %1153 = vmatpush1.msra.mxu0 %v1120
    %1154 = vmatprep.subr.mxu0 0.0
    %1155 = vmatpush1.msra.mxu0 0.0
    %1156 = vmatprep.subr.mxu0 0.0
    %1157 = vmatpush1.msra.mxu0 0.0
    %1158 = vmatprep.subr.mxu0 0.0
    %1159 = vmatpush1.msra.mxu0 0.0
    %1160 = vmatprep.subr.mxu0 0.0
    %1161 = vmatpush1.msra.mxu0 0.0
    %1162 = vmatprep.subr.mxu0 0.0
    %1163 = vmatpush1.msra.mxu0 0.0
    %1164 = vmatprep.subr.mxu0 0.0
    %1165 = vmatpush1.msra.mxu0 0.0
    %1166 = vmatprep.subr.mxu0 0.0
    %1167 = vmatpush1.msra.mxu0 0.0
    %1168 = vmatprep.subr.mxu0 0.0
    %1169 = vmatpush1.msra.mxu0 0.0
    %1170 = vmatprep.subr.mxu0 0.0
    %1171 = vmatpush1.msra.mxu0 0.0
    %1172 = vmatprep.subr.mxu0 0.0
    %1173 = vmatpush1.msra.mxu0 0.0
    %1174 = vmatprep.subr.mxu0 0.0
    %1175 = vmatpush1.msra.mxu0 0.0
    %1176 = vmatprep.subr.mxu0 0.0
    %1177 = vmatpush1.msra.mxu0 0.0
    %1178 = vmatprep.subr.mxu0 0.0
    %1179 = vmatpush1.msra.mxu0 0.0
    %1180 = vmatprep.subr.mxu0 0.0
    %1181 = vmatpush1.msra.mxu0 0.0
    %1182 = vmatprep.subr.mxu0 0.0
    %1183 = vmatpush1.msra.mxu0 0.0
    %1184 = vmatprep.subr.mxu0 0.0
    %1185 = vmatpush1.msra.mxu0 0.0
    %1186 = vmatprep.mubr.f32.mxu0 0.0
    %1187 = vmatmul.mubr.f32.gmra.mrb[0].mxu0 0.0
    %v1188 = vpop.f32.mrb[0].mxu0
    %v1189 = vadd.f32 0.0, %v1188
    %v1190 = vpop.f32.mrb[0].mxu0
    %1191 = vdwg.mxu0
    %v1192 = vadd.f32 %v1121, %v1189
    %v1193 = vxor.u32 %v1192, 2147483648
    %v1194 = vmul.f32 %v1193, 1.442695
    %v1195 = vpow.pop %v1194
    %v1196 = vadd.f32 %v1195, 1.0
    %v1197 = vrcp.pop %v1196
    %v1198 = vmul.f32 1.0, %v1197
    %v1199 = vtanh.pop %v1192
    %1200 = vrot.lane.b32.xlu0 %v1198, 112
    %v1201 = vpop.permute.xlu0 %1200
    %1202 = vrot.lane.b32.xlu0 %v1199, 96
    %v1203 = vpop.permute.xlu0 %1202
    %1204 = vrot.lane.b32.xlu0 %v1198, 80
    %v1205 = vpop.permute.xlu0 %1204
    %v1206 = vmul.f32 %v1201, 0.0
    %v1207 = vmul.f32 %v1198, %v1203
    %v1208 = vadd.f32 %v1206, %v1207
    %v1209 = vtanh.pop %v1208
    %v1210 = vmul.f32 %v1205, %v1209
    %v1211 = vtanh.pop %v1210
    %v1212 = vadd.f32 %v1211, 0.0
    %v1213 = vld [vmem:[#allocation3 + $0x8] sm:$0xff]
    %1214 = vmatprep.subr.mxu0 0.0
    %1215 = vmatpush1.msra.mxu0 %v1105
    %1216 = vmatprep.subr.mxu0 0.0
    %1217 = vmatpush1.msra.mxu0 %v1106
    %1218 = vmatprep.subr.mxu0 0.0
    %1219 = vmatpush1.msra.mxu0 %v1107
    %1220 = vmatprep.subr.mxu0 0.0
    %1221 = vmatpush1.msra.mxu0 %v1108
    %1222 = vmatprep.subr.mxu0 0.0
    %1223 = vmatpush1.msra.mxu0 %v1109
    %1224 = vmatprep.subr.mxu0 0.0
    %1225 = vmatpush1.msra.mxu0 %v1110
    %1226 = vmatprep.subr.mxu0 0.0
    %1227 = vmatpush1.msra.mxu0 %v1111
    %1228 = vmatprep.subr.mxu0 0.0
    %1229 = vmatpush1.msra.mxu0 %v1112
    %1230 = vmatprep.subr.mxu0 0.0
    %1231 = vmatpush1.msra.mxu0 %v1113
    %1232 = vmatprep.subr.mxu0 0.0
    %1233 = vmatpush1.msra.mxu0 %v1114
    %1234 = vmatprep.subr.mxu0 0.0
    %1235 = vmatpush1.msra.mxu0 %v1115
    %1236 = vmatprep.subr.mxu0 0.0
    %1237 = vmatpush1.msra.mxu0 %v1116
    %1238 = vmatprep.subr.mxu0 0.0
    %1239 = vmatpush1.msra.mxu0 %v1117
    %1240 = vmatprep.subr.mxu0 0.0
    %1241 = vmatpush1.msra.mxu0 %v1118
    %1242 = vmatprep.subr.mxu0 0.0
    %1243 = vmatpush1.msra.mxu0 %v1119
    %1244 = vmatprep.subr.mxu0 0.0
    %1245 = vmatpush1.msra.mxu0 %v1120
    %1246 = vmatprep.subr.mxu0 0.0
    %1247 = vmatpush1.msra.mxu0 0.0
    %1248 = vmatprep.subr.mxu0 0.0
    %1249 = vmatpush1.msra.mxu0 0.0
    %1250 = vmatprep.subr.mxu0 0.0
    %1251 = vmatpush1.msra.mxu0 0.0
    %1252 = vmatprep.subr.mxu0 0.0
    %1253 = vmatpush1.msra.mxu0 0.0
    %1254 = vmatprep.subr.mxu0 0.0
    %1255 = vmatpush1.msra.mxu0 0.0
    %1256 = vmatprep.subr.mxu0 0.0
    %1257 = vmatpush1.msra.mxu0 0.0
    %1258 = vmatprep.subr.mxu0 0.0
    %1259 = vmatpush1.msra.mxu0 0.0
    %1260 = vmatprep.subr.mxu0 0.0
    %1261 = vmatpush1.msra.mxu0 0.0
    %1262 = vmatprep.subr.mxu0 0.0
    %1263 = vmatpush1.msra.mxu0 0.0
    %1264 = vmatprep.subr.mxu0 0.0
    %1265 = vmatpush1.msra.mxu0 0.0
    %1266 = vmatprep.subr.mxu0 0.0
    %1267 = vmatpush1.msra.mxu0 0.0
    %1268 = vmatprep.subr.mxu0 0.0
    %1269 = vmatpush1.msra.mxu0 0.0
    %1270 = vmatprep.subr.mxu0 0.0
    %1271 = vmatpush1.msra.mxu0 0.0
    %1272 = vmatprep.subr.mxu0 0.0
    %1273 = vmatpush1.msra.mxu0 0.0
    %1274 = vmatprep.subr.mxu0 0.0
    %1275 = vmatpush1.msra.mxu0 0.0
    %1276 = vmatprep.subr.mxu0 0.0
    %1277 = vmatpush1.msra.mxu0 0.0
    %1278 = vmatprep.mubr.f32.mxu0 0.0
    %1279 = vmatmul.mubr.f32.gmra.mrb[0].mxu0 %v1210
    %v1280 = vpop.f32.mrb[0].mxu0
    %v1281 = vadd.f32 0.0, %v1280
    %v1282 = vpop.f32.mrb[0].mxu0
    %1283 = vdwg.mxu0
    %v1284 = vadd.f32 %v1213, %v1281
    %v1285 = vxor.u32 %v1284, 2147483648
    %v1286 = vmul.f32 %v1285, 1.442695
    %v1287 = vpow.pop %v1286
    %v1288 = vadd.f32 %v1287, 1.0
    %v1289 = vrcp.pop %v1288
    %v1290 = vmul.f32 1.0, %v1289
    %v1291 = vtanh.pop %v1284
    %1292 = vrot.lane.b32.xlu0 %v1290, 112
    %v1293 = vpop.permute.xlu0 %1292
    %1294 = vrot.lane.b32.xlu0 %v1291, 96
    %v1295 = vpop.permute.xlu0 %1294
    %1296 = vrot.lane.b32.xlu0 %v1290, 80
    %v1297 = vpop.permute.xlu0 %1296
    %v1298 = vmul.f32 %v1293, %v1208
    %v1299 = vmul.f32 %v1290, %v1295
    %v1300 = vadd.f32 %v1298, %v1299
    %v1301 = vtanh.pop %v1300
    %v1302 = vmul.f32 %v1297, %v1301
    %v1303 = vtanh.pop %v1302
    %v1304 = vadd.f32 %v1212, %v1303
    %v1305 = vld [vmem:[#allocation3 + $0x10] sm:$0xff]
    %1306 = vmatprep.subr.mxu0 0.0
    %1307 = vmatpush1.msra.mxu0 %v1105
    %1308 = vmatprep.subr.mxu0 0.0
    %1309 = vmatpush1.msra.mxu0 %v1106
    %1310 = vmatprep.subr.mxu0 0.0
    %1311 = vmatpush1.msra.mxu0 %v1107
    %1312 = vmatprep.subr.mxu0 0.0
    %1313 = vmatpush1.msra.mxu0 %v1108
    %1314 = vmatprep.subr.mxu0 0.0
    %1315 = vmatpush1.msra.mxu0 %v1109
    %1316 = vmatprep.subr.mxu0 0.0
    %1317 = vmatpush1.msra.mxu0 %v1110
    %1318 = vmatprep.subr.mxu0 0.0
    %1319 = vmatpush1.msra.mxu0 %v1111
    %1320 = vmatprep.subr.mxu0 0.0
    %1321 = vmatpush1.msra.mxu0 %v1112
    %1322 = vmatprep.subr.mxu0 0.0
    %1323 = vmatpush1.msra.mxu0 %v1113
    %1324 = vmatprep.subr.mxu0 0.0
    %1325 = vmatpush1.msra.mxu0 %v1114
    %1326 = vmatprep.subr.mxu0 0.0
    %1327 = vmatpush1.msra.mxu0 %v1115
    %1328 = vmatprep.subr.mxu0 0.0
    %1329 = vmatpush1.msra.mxu0 %v1116
    %1330 = vmatprep.subr.mxu0 0.0
    %1331 = vmatpush1.msra.mxu0 %v1117
    %1332 = vmatprep.subr.mxu0 0.0
    %1333 = vmatpush1.msra.mxu0 %v1118
    %1334 = vmatprep.subr.mxu0 0.0
    %1335 = vmatpush1.msra.mxu0 %v1119
    %1336 = vmatprep.subr.mxu0 0.0
    %1337 = vmatpush1.msra.mxu0 %v1120
    %1338 = vmatprep.subr.mxu0 0.0
    %1339 = vmatpush1.msra.mxu0 0.0
    %1340 = vmatprep.subr.mxu0 0.0
    %1341 = vmatpush1.msra.mxu0 0.0
    %1342 = vmatprep.subr.mxu0 0.0
    %1343 = vmatpush1.msra.mxu0 0.0
    %1344 = vmatprep.subr.mxu0 0.0
    %1345 = vmatpush1.msra.mxu0 0.0
    %1346 = vmatprep.subr.mxu0 0.0
    %1347 = vmatpush1.msra.mxu0 0.0
    %1348 = vmatprep.subr.mxu0 0.0
    %1349 = vmatpush1.msra.mxu0 0.0
    %1350 = vmatprep.subr.mxu0 0.0
    %1351 = vmatpush1.msra.mxu0 0.0
    %1352 = vmatprep.subr.mxu0 0.0
    %1353 = vmatpush1.msra.mxu0 0.0
    %1354 = vmatprep.subr.mxu0 0.0
    %1355 = vmatpush1.msra.mxu0 0.0
    %1356 = vmatprep.subr.mxu0 0.0
    %1357 = vmatpush1.msra.mxu0 0.0
    %1358 = vmatprep.subr.mxu0 0.0
    %1359 = vmatpush1.msra.mxu0 0.0
    %1360 = vmatprep.subr.mxu0 0.0
    %1361 = vmatpush1.msra.mxu0 0.0
    %1362 = vmatprep.subr.mxu0 0.0
    %1363 = vmatpush1.msra.mxu0 0.0
    %1364 = vmatprep.subr.mxu0 0.0
    %1365 = vmatpush1.msra.mxu0 0.0
    %1366 = vmatprep.subr.mxu0 0.0
    %1367 = vmatpush1.msra.mxu0 0.0
    %1368 = vmatprep.subr.mxu0 0.0
    %1369 = vmatpush1.msra.mxu0 0.0
    %1370 = vmatprep.mubr.f32.mxu0 0.0
    %1371 = vmatmul.mubr.f32.gmra.mrb[0].mxu0 %v1302
    %v1372 = vpop.f32.mrb[0].mxu0
    %v1373 = vadd.f32 0.0, %v1372
    %v1374 = vpop.f32.mrb[0].mxu0
    %1375 = vdwg.mxu0
    %v1376 = vadd.f32 %v1305, %v1373
    %v1377 = vxor.u32 %v1376, 2147483648
    %v1378 = vmul.f32 %v1377, 1.442695
    %v1379 = vpow.pop %v1378
    %v1380 = vadd.f32 %v1379, 1.0
    %v1381 = vrcp.pop %v1380
    %v1382 = vmul.f32 1.0, %v1381
    %v1383 = vtanh.pop %v1376
    %1384 = vrot.lane.b32.xlu0 %v1382, 112
    %v1385 = vpop.permute.xlu0 %1384
    %1386 = vrot.lane.b32.xlu0 %v1383, 96
    %v1387 = vpop.permute.xlu0 %1386
    %1388 = vrot.lane.b32.xlu0 %v1382, 80
    %v1389 = vpop.permute.xlu0 %1388
    %v1390 = vmul.f32 %v1385, %v1300
    %v1391 = vmul.f32 %v1382, %v1387
    %v1392 = vadd.f32 %v1390, %v1391
    %v1393 = vtanh.pop %v1392
    %v1394 = vmul.f32 %v1389, %v1393
    %v1395 = vtanh.pop %v1394
    %v1396 = vadd.f32 %v1304, %v1395
    %v1397 = vld [vmem:[#allocation3 + $0x18] sm:$0xff]
    %1398 = vmatprep.subr.mxu0 0.0
    %1399 = vmatpush1.msra.mxu0 %v1105
    %1400 = vmatprep.subr.mxu0 0.0
    %1401 = vmatpush1.msra.mxu0 %v1106
    %1402 = vmatprep.subr.mxu0 0.0
    %1403 = vmatpush1.msra.mxu0 %v1107
    %1404 = vmatprep.subr.mxu0 0.0
    %1405 = vmatpush1.msra.mxu0 %v1108
    %1406 = vmatprep.subr.mxu0 0.0
    %1407 = vmatpush1.msra.mxu0 %v1109
    %1408 = vmatprep.subr.mxu0 0.0
    %1409 = vmatpush1.msra.mxu0 %v1110
    %1410 = vmatprep.subr.mxu0 0.0
    %1411 = vmatpush1.msra.mxu0 %v1111
    %1412 = vmatprep.subr.mxu0 0.0
    %1413 = vmatpush1.msra.mxu0 %v1112
    %1414 = vmatprep.subr.mxu0 0.0
    %1415 = vmatpush1.msra.mxu0 %v1113
    %1416 = vmatprep.subr.mxu0 0.0
    %1417 = vmatpush1.msra.mxu0 %v1114
    %1418 = vmatprep.subr.mxu0 0.0
    %1419 = vmatpush1.msra.mxu0 %v1115
    %1420 = vmatprep.subr.mxu0 0.0
    %1421 = vmatpush1.msra.mxu0 %v1116
    %1422 = vmatprep.subr.mxu0 0.0
    %1423 = vmatpush1.msra.mxu0 %v1117
    %1424 = vmatprep.subr.mxu0 0.0
    %1425 = vmatpush1.msra.mxu0 %v1118
    %1426 = vmatprep.subr.mxu0 0.0
    %1427 = vmatpush1.msra.mxu0 %v1119
    %1428 = vmatprep.subr.mxu0 0.0
    %1429 = vmatpush1.msra.mxu0 %v1120
    %1430 = vmatprep.subr.mxu0 0.0
    %1431 = vmatpush1.msra.mxu0 0.0
    %1432 = vmatprep.subr.mxu0 0.0
    %1433 = vmatpush1.msra.mxu0 0.0
    %1434 = vmatprep.subr.mxu0 0.0
    %1435 = vmatpush1.msra.mxu0 0.0
    %1436 = vmatprep.subr.mxu0 0.0
    %1437 = vmatpush1.msra.mxu0 0.0
    %1438 = vmatprep.subr.mxu0 0.0
    %1439 = vmatpush1.msra.mxu0 0.0
    %1440 = vmatprep.subr.mxu0 0.0
    %1441 = vmatpush1.msra.mxu0 0.0
    %1442 = vmatprep.subr.mxu0 0.0
    %1443 = vmatpush1.msra.mxu0 0.0
    %1444 = vmatprep.subr.mxu0 0.0
    %1445 = vmatpush1.msra.mxu0 0.0
    %1446 = vmatprep.subr.mxu0 0.0
    %1447 = vmatpush1.msra.mxu0 0.0
    %1448 = vmatprep.subr.mxu0 0.0
    %1449 = vmatpush1.msra.mxu0 0.0
    %1450 = vmatprep.subr.mxu0 0.0
    %1451 = vmatpush1.msra.mxu0 0.0
    %1452 = vmatprep.subr.mxu0 0.0
    %1453 = vmatpush1.msra.mxu0 0.0
    %1454 = vmatprep.subr.mxu0 0.0
    %1455 = vmatpush1.msra.mxu0 0.0
    %1456 = vmatprep.subr.mxu0 0.0
    %1457 = vmatpush1.msra.mxu0 0.0
    %1458 = vmatprep.subr.mxu0 0.0
    %1459 = vmatpush1.msra.mxu0 0.0
    %1460 = vmatprep.subr.mxu0 0.0
    %1461 = vmatpush1.msra.mxu0 0.0
    %1462 = vmatprep.mubr.f32.mxu0 0.0
    %1463 = vmatmul.mubr.f32.gmra.mrb[0].mxu0 %v1394
    %v1464 = vpop.f32.mrb[0].mxu0
    %v1465 = vadd.f32 0.0, %v1464
    %v1466 = vpop.f32.mrb[0].mxu0
    %1467 = vdwg.mxu0
    %v1468 = vadd.f32 %v1397, %v1465
    %v1469 = vxor.u32 %v1468, 2147483648
    %v1470 = vmul.f32 %v1469, 1.442695
    %v1471 = vpow.pop %v1470
    %v1472 = vadd.f32 %v1471, 1.0
    %v1473 = vrcp.pop %v1472
    %v1474 = vmul.f32 1.0, %v1473
    %v1475 = vtanh.pop %v1468
    %1476 = vrot.lane.b32.xlu0 %v1474, 112
    %v1477 = vpop.permute.xlu0 %1476
    %1478 = vrot.lane.b32.xlu0 %v1475, 96
    %v1479 = vpop.permute.xlu0 %1478
    %1480 = vrot.lane.b32.xlu0 %v1474, 80
    %v1481 = vpop.permute.xlu0 %1480
    %v1482 = vmul.f32 %v1477, %v1392
    %v1483 = vmul.f32 %v1474, %v1479
    %v1484 = vadd.f32 %v1482, %v1483
    %v1485 = vtanh.pop %v1484
    %v1486 = vmul.f32 %v1481, %v1485
    %v1487 = vtanh.pop %v1486
    %v1488 = vadd.f32 %v1396, %v1487
    %v1489 = vld [vmem:[#allocation3 + $0x20] sm:$0xff]
    %1490 = vmatprep.subr.mxu0 0.0
    %1491 = vmatpush1.msra.mxu0 %v1105
    %1492 = vmatprep.subr.mxu0 0.0
    %1493 = vmatpush1.msra.mxu0 %v1106
    %1494 = vmatprep.subr.mxu0 0.0
    %1495 = vmatpush1.msra.mxu0 %v1107
    %1496 = vmatprep.subr.mxu0 0.0
    %1497 = vmatpush1.msra.mxu0 %v1108
    %1498 = vmatprep.subr.mxu0 0.0
    %1499 = vmatpush1.msra.mxu0 %v1109
    %1500 = vmatprep.subr.mxu0 0.0
    %1501 = vmatpush1.msra.mxu0 %v1110
    %1502 = vmatprep.subr.mxu0 0.0
    %1503 = vmatpush1.msra.mxu0 %v1111
    %1504 = vmatprep.subr.mxu0 0.0
    %1505 = vmatpush1.msra.mxu0 %v1112
    %1506 = vmatprep.subr.mxu0 0.0
    %1507 = vmatpush1.msra.mxu0 %v1113
    %1508 = vmatprep.subr.mxu0 0.0
    %1509 = vmatpush1.msra.mxu0 %v1114
    %1510 = vmatprep.subr.mxu0 0.0
    %1511 = vmatpush1.msra.mxu0 %v1115
    %1512 = vmatprep.subr.mxu0 0.0
    %1513 = vmatpush1.msra.mxu0 %v1116
    %1514 = vmatprep.subr.mxu0 0.0
    %1515 = vmatpush1.msra.mxu0 %v1117
    %1516 = vmatprep.subr.mxu0 0.0
    %1517 = vmatpush1.msra.mxu0 %v1118
    %1518 = vmatprep.subr.mxu0 0.0
    %1519 = vmatpush1.msra.mxu0 %v1119
    %1520 = vmatprep.subr.mxu0 0.0
    %1521 = vmatpush1.msra.mxu0 %v1120
    %1522 = vmatprep.subr.mxu0 0.0
    %1523 = vmatpush1.msra.mxu0 0.0
    %1524 = vmatprep.subr.mxu0 0.0
    %1525 = vmatpush1.msra.mxu0 0.0
    %1526 = vmatprep.subr.mxu0 0.0
    %1527 = vmatpush1.msra.mxu0 0.0
    %1528 = vmatprep.subr.mxu0 0.0
    %1529 = vmatpush1.msra.mxu0 0.0
    %1530 = vmatprep.subr.mxu0 0.0
    %1531 = vmatpush1.msra.mxu0 0.0
    %1532 = vmatprep.subr.mxu0 0.0
    %1533 = vmatpush1.msra.mxu0 0.0
    %1534 = vmatprep.subr.mxu0 0.0
    %1535 = vmatpush1.msra.mxu0 0.0
    %1536 = vmatprep.subr.mxu0 0.0
    %1537 = vmatpush1.msra.mxu0 0.0
    %1538 = vmatprep.subr.mxu0 0.0
    %1539 = vmatpush1.msra.mxu0 0.0
    %1540 = vmatprep.subr.mxu0 0.0
    %1541 = vmatpush1.msra.mxu0 0.0
    %1542 = vmatprep.subr.mxu0 0.0
    %1543 = vmatpush1.msra.mxu0 0.0
    %1544 = vmatprep.subr.mxu0 0.0
    %1545 = vmatpush1.msra.mxu0 0.0
    %1546 = vmatprep.subr.mxu0 0.0
    %1547 = vmatpush1.msra.mxu0 0.0
    %1548 = vmatprep.subr.mxu0 0.0
    %1549 = vmatpush1.msra.mxu0 0.0
    %1550 = vmatprep.subr.mxu0 0.0
    %1551 = vmatpush1.msra.mxu0 0.0
    %1552 = vmatprep.subr.mxu0 0.0
    %1553 = vmatpush1.msra.mxu0 0.0
    %1554 = vmatprep.mubr.f32.mxu0 0.0
    %1555 = vmatmul.mubr.f32.gmra.mrb[0].mxu0 %v1486
    %v1556 = vpop.f32.mrb[0].mxu0
    %v1557 = vadd.f32 0.0, %v1556
    %v1558 = vpop.f32.mrb[0].mxu0
    %1559 = vdwg.mxu0
    %v1560 = vadd.f32 %v1489, %v1557
    %v1561 = vxor.u32 %v1560, 2147483648
    %v1562 = vmul.f32 %v1561, 1.442695
    %v1563 = vpow.pop %v1562
    %v1564 = vadd.f32 %v1563, 1.0
    %v1565 = vrcp.pop %v1564
    %v1566 = vmul.f32 1.0, %v1565
    %v1567 = vtanh.pop %v1560
    %1568 = vrot.lane.b32.xlu0 %v1566, 112
    %v1569 = vpop.permute.xlu0 %1568
    %1570 = vrot.lane.b32.xlu0 %v1567, 96
    %v1571 = vpop.permute.xlu0 %1570
    %1572 = vrot.lane.b32.xlu0 %v1566, 80
    %v1573 = vpop.permute.xlu0 %1572
    %v1574 = vmul.f32 %v1569, %v1484
    %v1575 = vmul.f32 %v1566, %v1571
    %v1576 = vadd.f32 %v1574, %v1575
    %v1577 = vtanh.pop %v1576
    %v1578 = vmul.f32 %v1573, %v1577
    %v1579 = vtanh.pop %v1578
    %v1580 = vadd.f32 %v1488, %v1579
    %v1581 = vld [vmem:[#allocation3 + $0x28] sm:$0xff]
    %1582 = vmatprep.subr.mxu0 0.0
    %1583 = vmatpush1.msra.mxu0 %v1105
    %1584 = vmatprep.subr.mxu0 0.0
    %1585 = vmatpush1.msra.mxu0 %v1106
    %1586 = vmatprep.subr.mxu0 0.0
    %1587 = vmatpush1.msra.mxu0 %v1107
    %1588 = vmatprep.subr.mxu0 0.0
    %1589 = vmatpush1.msra.mxu0 %v1108
    %1590 = vmatprep.subr.mxu0 0.0
    %1591 = vmatpush1.msra.mxu0 %v1109
    %1592 = vmatprep.subr.mxu0 0.0
    %1593 = vmatpush1.msra.mxu0 %v1110
    %1594 = vmatprep.subr.mxu0 0.0
    %1595 = vmatpush1.msra.mxu0 %v1111
    %1596 = vmatprep.subr.mxu0 0.0
    %1597 = vmatpush1.msra.mxu0 %v1112
    %1598 = vmatprep.subr.mxu0 0.0
    %1599 = vmatpush1.msra.mxu0 %v1113
    %1600 = vmatprep.subr.mxu0 0.0
    %1601 = vmatpush1.msra.mxu0 %v1114
    %1602 = vmatprep.subr.mxu0 0.0
    %1603 = vmatpush1.msra.mxu0 %v1115
    %1604 = vmatprep.subr.mxu0 0.0
    %1605 = vmatpush1.msra.mxu0 %v1116
    %1606 = vmatprep.subr.mxu0 0.0
    %1607 = vmatpush1.msra.mxu0 %v1117
    %1608 = vmatprep.subr.mxu0 0.0
    %1609 = vmatpush1.msra.mxu0 %v1118
    %1610 = vmatprep.subr.mxu0 0.0
    %1611 = vmatpush1.msra.mxu0 %v1119
    %1612 = vmatprep.subr.mxu0 0.0
    %1613 = vmatpush1.msra.mxu0 %v1120
    %1614 = vmatprep.subr.mxu0 0.0
    %1615 = vmatpush1.msra.mxu0 0.0
    %1616 = vmatprep.subr.mxu0 0.0
    %1617 = vmatpush1.msra.mxu0 0.0
    %1618 = vmatprep.subr.mxu0 0.0
    %1619 = vmatpush1.msra.mxu0 0.0
    %1620 = vmatprep.subr.mxu0 0.0
    %1621 = vmatpush1.msra.mxu0 0.0
    %1622 = vmatprep.subr.mxu0 0.0
    %1623 = vmatpush1.msra.mxu0 0.0
    %1624 = vmatprep.subr.mxu0 0.0
    %1625 = vmatpush1.msra.mxu0 0.0
    %1626 = vmatprep.subr.mxu0 0.0
    %1627 = vmatpush1.msra.mxu0 0.0
    %1628 = vmatprep.subr.mxu0 0.0
    %1629 = vmatpush1.msra.mxu0 0.0
    %1630 = vmatprep.subr.mxu0 0.0
    %1631 = vmatpush1.msra.mxu0 0.0
    %1632 = vmatprep.subr.mxu0 0.0
    %1633 = vmatpush1.msra.mxu0 0.0
    %1634 = vmatprep.subr.mxu0 0.0
    %1635 = vmatpush1.msra.mxu0 0.0
    %1636 = vmatprep.subr.mxu0 0.0
    %1637 = vmatpush1.msra.mxu0 0.0
    %1638 = vmatprep.subr.mxu0 0.0
    %1639 = vmatpush1.msra.mxu0 0.0
    %1640 = vmatprep.subr.mxu0 0.0
    %1641 = vmatpush1.msra.mxu0 0.0
    %1642 = vmatprep.subr.mxu0 0.0
    %1643 = vmatpush1.msra.mxu0 0.0
    %1644 = vmatprep.subr.mxu0 0.0
    %1645 = vmatpush1.msra.mxu0 0.0
    %1646 = vmatprep.mubr.f32.mxu0 0.0
    %1647 = vmatmul.mubr.f32.gmra.mrb[0].mxu0 %v1578
    %v1648 = vpop.f32.mrb[0].mxu0
    %v1649 = vadd.f32 0.0, %v1648
    %v1650 = vpop.f32.mrb[0].mxu0
    %1651 = vdwg.mxu0
    %v1652 = vadd.f32 %v1581, %v1649
    %v1653 = vxor.u32 %v1652, 2147483648
    %v1654 = vmul.f32 %v1653, 1.442695
    %v1655 = vpow.pop %v1654
    %v1656 = vadd.f32 %v1655, 1.0
    %v1657 = vrcp.pop %v1656
    %v1658 = vmul.f32 1.0, %v1657
    %v1659 = vtanh.pop %v1652
    %1660 = vrot.lane.b32.xlu0 %v1658, 112
    %v1661 = vpop.permute.xlu0 %1660
    %1662 = vrot.lane.b32.xlu0 %v1659, 96
    %v1663 = vpop.permute.xlu0 %1662
    %1664 = vrot.lane.b32.xlu0 %v1658, 80
    %v1665 = vpop.permute.xlu0 %1664
    %v1666 = vmul.f32 %v1661, %v1576
    %v1667 = vmul.f32 %v1658, %v1663
    %v1668 = vadd.f32 %v1666, %v1667
    %v1669 = vtanh.pop %v1668
    %v1670 = vmul.f32 %v1665, %v1669
    %v1671 = vtanh.pop %v1670
    %v1672 = vadd.f32 %v1580, %v1671
    %v1673 = vld [vmem:[#allocation3 + $0x30] sm:$0xff]
    %1674 = vmatprep.subr.mxu0 0.0
    %1675 = vmatpush1.msra.mxu0 %v1105
    %1676 = vmatprep.subr.mxu0 0.0
    %1677 = vmatpush1.msra.mxu0 %v1106
    %1678 = vmatprep.subr.mxu0 0.0
    %1679 = vmatpush1.msra.mxu0 %v1107
    %1680 = vmatprep.subr.mxu0 0.0
    %1681 = vmatpush1.msra.mxu0 %v1108
    %1682 = vmatprep.subr.mxu0 0.0
    %1683 = vmatpush1.msra.mxu0 %v1109
    %1684 = vmatprep.subr.mxu0 0.0
    %1685 = vmatpush1.msra.mxu0 %v1110
    %1686 = vmatprep.subr.mxu0 0.0
    %1687 = vmatpush1.msra.mxu0 %v1111
    %1688 = vmatprep.subr.mxu0 0.0
    %1689 = vmatpush1.msra.mxu0 %v1112
    %1690 = vmatprep.subr.mxu0 0.0
    %1691 = vmatpush1.msra.mxu0 %v1113
    %1692 = vmatprep.subr.mxu0 0.0
    %1693 = vmatpush1.msra.mxu0 %v1114
    %1694 = vmatprep.subr.mxu0 0.0
    %1695 = vmatpush1.msra.mxu0 %v1115
    %1696 = vmatprep.subr.mxu0 0.0
    %1697 = vmatpush1.msra.mxu0 %v1116
    %1698 = vmatprep.subr.mxu0 0.0
    %1699 = vmatpush1.msra.mxu0 %v1117
    %1700 = vmatprep.subr.mxu0 0.0
    %1701 = vmatpush1.msra.mxu0 %v1118
    %1702 = vmatprep.subr.mxu0 0.0
    %1703 = vmatpush1.msra.mxu0 %v1119
    %1704 = vmatprep.subr.mxu0 0.0
    %1705 = vmatpush1.msra.mxu0 %v1120
    %1706 = vmatprep.subr.mxu0 0.0
    %1707 = vmatpush1.msra.mxu0 0.0
    %1708 = vmatprep.subr.mxu0 0.0
    %1709 = vmatpush1.msra.mxu0 0.0
    %1710 = vmatprep.subr.mxu0 0.0
    %1711 = vmatpush1.msra.mxu0 0.0
    %1712 = vmatprep.subr.mxu0 0.0
    %1713 = vmatpush1.msra.mxu0 0.0
    %1714 = vmatprep.subr.mxu0 0.0
    %1715 = vmatpush1.msra.mxu0 0.0
    %1716 = vmatprep.subr.mxu0 0.0
    %1717 = vmatpush1.msra.mxu0 0.0
    %1718 = vmatprep.subr.mxu0 0.0
    %1719 = vmatpush1.msra.mxu0 0.0
    %1720 = vmatprep.subr.mxu0 0.0
    %1721 = vmatpush1.msra.mxu0 0.0
    %1722 = vmatprep.subr.mxu0 0.0
    %1723 = vmatpush1.msra.mxu0 0.0
    %1724 = vmatprep.subr.mxu0 0.0
    %1725 = vmatpush1.msra.mxu0 0.0
    %1726 = vmatprep.subr.mxu0 0.0
    %1727 = vmatpush1.msra.mxu0 0.0
    %1728 = vmatprep.subr.mxu0 0.0
    %1729 = vmatpush1.msra.mxu0 0.0
    %1730 = vmatprep.subr.mxu0 0.0
    %1731 = vmatpush1.msra.mxu0 0.0
    %1732 = vmatprep.subr.mxu0 0.0
    %1733 = vmatpush1.msra.mxu0 0.0
    %1734 = vmatprep.subr.mxu0 0.0
    %1735 = vmatpush1.msra.mxu0 0.0
    %1736 = vmatprep.subr.mxu0 0.0
    %1737 = vmatpush1.msra.mxu0 0.0
    %1738 = vmatprep.mubr.f32.mxu0 0.0
    %1739 = vmatmul.mubr.f32.gmra.mrb[0].mxu0 %v1670
    %v1740 = vpop.f32.mrb[0].mxu0
    %v1741 = vadd.f32 0.0, %v1740
    %v1742 = vpop.f32.mrb[0].mxu0
    %1743 = vdwg.mxu0
    %v1744 = vadd.f32 %v1673, %v1741
    %v1745 = vxor.u32 %v1744, 2147483648
    %v1746 = vmul.f32 %v1745, 1.442695
    %v1747 = vpow.pop %v1746
    %v1748 = vadd.f32 %v1747, 1.0
    %v1749 = vrcp.pop %v1748
    %v1750 = vmul.f32 1.0, %v1749
    %v1751 = vtanh.pop %v1744
    %1752 = vrot.lane.b32.xlu0 %v1750, 112
    %v1753 = vpop.permute.xlu0 %1752
    %1754 = vrot.lane.b32.xlu0 %v1751, 96
    %v1755 = vpop.permute.xlu0 %1754
    %1756 = vrot.lane.b32.xlu0 %v1750, 80
    %v1757 = vpop.permute.xlu0 %1756
    %v1758 = vmul.f32 %v1753, %v1668
    %v1759 = vmul.f32 %v1750, %v1755
    %v1760 = vadd.f32 %v1758, %v1759
    %v1761 = vtanh.pop %v1760
    %v1762 = vmul.f32 %v1757, %v1761
    %v1763 = vtanh.pop %v1762
    %v1764 = vadd.f32 %v1672, %v1763
    %v1765 = vld [vmem:[#allocation3 + $0x38] sm:$0xff]
    %1766 = vmatprep.subr.mxu0 0.0
    %1767 = vmatpush1.msra.mxu0 %v1105
    %1768 = vmatprep.subr.mxu0 0.0
    %1769 = vmatpush1.msra.mxu0 %v1106
    %1770 = vmatprep.subr.mxu0 0.0
    %1771 = vmatpush1.msra.mxu0 %v1107
    %1772 = vmatprep.subr.mxu0 0.0
    %1773 = vmatpush1.msra.mxu0 %v1108
    %1774 = vmatprep.subr.mxu0 0.0
    %1775 = vmatpush1.msra.mxu0 %v1109
    %1776 = vmatprep.subr.mxu0 0.0
    %1777 = vmatpush1.msra.mxu0 %v1110
    %1778 = vmatprep.subr.mxu0 0.0
    %1779 = vmatpush1.msra.mxu0 %v1111
    %1780 = vmatprep.subr.mxu0 0.0
    %1781 = vmatpush1.msra.mxu0 %v1112
    %1782 = vmatprep.subr.mxu0 0.0
    %1783 = vmatpush1.msra.mxu0 %v1113
    %1784 = vmatprep.subr.mxu0 0.0
    %1785 = vmatpush1.msra.mxu0 %v1114
    %1786 = vmatprep.subr.mxu0 0.0
    %1787 = vmatpush1.msra.mxu0 %v1115
    %1788 = vmatprep.subr.mxu0 0.0
    %1789 = vmatpush1.msra.mxu0 %v1116
    %1790 = vmatprep.subr.mxu0 0.0
    %1791 = vmatpush1.msra.mxu0 %v1117
    %1792 = vmatprep.subr.mxu0 0.0
    %1793 = vmatpush1.msra.mxu0 %v1118
    %1794 = vmatprep.subr.mxu0 0.0
    %1795 = vmatpush1.msra.mxu0 %v1119
    %1796 = vmatprep.subr.mxu0 0.0
    %1797 = vmatpush1.msra.mxu0 %v1120
    %1798 = vmatprep.subr.mxu0 0.0
    %1799 = vmatpush1.msra.mxu0 0.0
    %1800 = vmatprep.subr.mxu0 0.0
    %1801 = vmatpush1.msra.mxu0 0.0
    %1802 = vmatprep.subr.mxu0 0.0
    %1803 = vmatpush1.msra.mxu0 0.0
    %1804 = vmatprep.subr.mxu0 0.0
    %1805 = vmatpush1.msra.mxu0 0.0
    %1806 = vmatprep.subr.mxu0 0.0
    %1807 = vmatpush1.msra.mxu0 0.0
    %1808 = vmatprep.subr.mxu0 0.0
    %1809 = vmatpush1.msra.mxu0 0.0
    %1810 = vmatprep.subr.mxu0 0.0
    %1811 = vmatpush1.msra.mxu0 0.0
    %1812 = vmatprep.subr.mxu0 0.0
    %1813 = vmatpush1.msra.mxu0 0.0
    %1814 = vmatprep.subr.mxu0 0.0
    %1815 = vmatpush1.msra.mxu0 0.0
    %1816 = vmatprep.subr.mxu0 0.0
    %1817 = vmatpush1.msra.mxu0 0.0
    %1818 = vmatprep.subr.mxu0 0.0
    %1819 = vmatpush1.msra.mxu0 0.0
    %1820 = vmatprep.subr.mxu0 0.0
    %1821 = vmatpush1.msra.mxu0 0.0
    %1822 = vmatprep.subr.mxu0 0.0
    %1823 = vmatpush1.msra.mxu0 0.0
    %1824 = vmatprep.subr.mxu0 0.0
    %1825 = vmatpush1.msra.mxu0 0.0
    %1826 = vmatprep.subr.mxu0 0.0
    %1827 = vmatpush1.msra.mxu0 0.0
    %1828 = vmatprep.subr.mxu0 0.0
    %1829 = vmatpush1.msra.mxu0 0.0
    %1830 = vmatprep.mubr.f32.mxu0 0.0
    %1831 = vmatmul.mubr.f32.gmra.mrb[0].mxu0 %v1762
    %v1832 = vpop.f32.mrb[0].mxu0
    %v1833 = vadd.f32 0.0, %v1832
    %v1834 = vpop.f32.mrb[0].mxu0
    %1835 = vdwg.mxu0
    %v1836 = vadd.f32 %v1765, %v1833
    %v1837 = vxor.u32 %v1836, 2147483648
    %v1838 = vmul.f32 %v1837, 1.442695
    %v1839 = vpow.pop %v1838
    %v1840 = vadd.f32 %v1839, 1.0
    %v1841 = vrcp.pop %v1840
    %v1842 = vmul.f32 1.0, %v1841
    %v1843 = vtanh.pop %v1836
    %1844 = vrot.lane.b32.xlu0 %v1842, 112
    %v1845 = vpop.permute.xlu0 %1844
    %1846 = vrot.lane.b32.xlu0 %v1843, 96
    %v1847 = vpop.permute.xlu0 %1846
    %1848 = vrot.lane.b32.xlu0 %v1842, 80
    %v1849 = vpop.permute.xlu0 %1848
    %v1850 = vmul.f32 %v1845, %v1760
    %v1851 = vmul.f32 %v1842, %v1847
    %v1852 = vadd.f32 %v1850, %v1851
    %v1853 = vtanh.pop %v1852
    %v1854 = vmul.f32 %v1849, %v1853
    %v1855 = vtanh.pop %v1854
    %v1856 = vadd.f32 %v1764, %v1855
    %v1857 = vld [vmem:[%s7] sm:$0xff]
    %v1858 = vld [vmem:[%s7 + $0x8] sm:$0xff]
    %v1859 = vld [vmem:[%s7 + $0x10] sm:$0xff]
    %v1860 = vld [vmem:[%s7 + $0x18] sm:$0xff]
    %v1861 = vld [vmem:[%s7 + $0x20] sm:$0xff]
    %v1862 = vld [vmem:[%s7 + $0x28] sm:$0xff]
    %v1863 = vld [vmem:[%s7 + $0x30] sm:$0xff]
    %v1864 = vld [vmem:[%s7 + $0x38] sm:$0xff]
    %v1865 = vld [vmem:[%s7 + $0x40] sm:$0xff]
    %v1866 = vld [vmem:[%s7 + $0x48] sm:$0xff]
    %v1867 = vld [vmem:[%s7 + $0x50] sm:$0xff]
    %v1868 = vld [vmem:[%s7 + $0x58] sm:$0xff]
    %v1869 = vld [vmem:[%s7 + $0x60] sm:$0xff]
    %v1870 = vld [vmem:[%s7 + $0x68] sm:$0xff]
    %v1871 = vld [vmem:[%s7 + $0x70] sm:$0xff]
    %v1872 = vld [vmem:[%s7 + $0x78] sm:$0xff]
    %v1873 = vld [vmem:[%s8] sm:$0x1]
    %v1875 = vlaneseq
    %v1876 = vshrl.u32 %v1875, 7
    %v1877 = vsub.s32 0, %v1876
    %v1878 = vrot.slane %v1873, %v1877
    %1880 = vmatprep.subr.mxu0 0.0
    %1881 = vmatpush1.msra.mxu0 %v1857
    %1882 = vmatprep.subr.mxu0 0.0
    %1883 = vmatpush1.msra.mxu0 %v1858
    %1884 = vmatprep.subr.mxu0 0.0
    %1885 = vmatpush1.msra.mxu0 %v1859
    %1886 = vmatprep.subr.mxu0 0.0
    %1887 = vmatpush1.msra.mxu0 %v1860
    %1888 = vmatprep.subr.mxu0 0.0
    %1889 = vmatpush1.msra.mxu0 %v1861
    %1890 = vmatprep.subr.mxu0 0.0
    %1891 = vmatpush1.msra.mxu0 %v1862
    %1892 = vmatprep.subr.mxu0 0.0
    %1893 = vmatpush1.msra.mxu0 %v1863
    %1894 = vmatprep.subr.mxu0 0.0
    %1895 = vmatpush1.msra.mxu0 %v1864
    %1896 = vmatprep.subr.mxu0 0.0
    %1897 = vmatpush1.msra.mxu0 %v1865
    %1898 = vmatprep.subr.mxu0 0.0
    %1899 = vmatpush1.msra.mxu0 %v1866
    %1900 = vmatprep.subr.mxu0 0.0
    %1901 = vmatpush1.msra.mxu0 %v1867
    %1902 = vmatprep.subr.mxu0 0.0
    %1903 = vmatpush1.msra.mxu0 %v1868
    %1904 = vmatprep.subr.mxu0 0.0
    %1905 = vmatpush1.msra.mxu0 %v1869
    %1906 = vmatprep.subr.mxu0 0.0
    %1907 = vmatpush1.msra.mxu0 %v1870
    %1908 = vmatprep.subr.mxu0 0.0
    %1909 = vmatpush1.msra.mxu0 %v1871
    %1910 = vmatprep.subr.mxu0 0.0
    %1911 = vmatpush1.msra.mxu0 %v1872
    %1912 = vmatprep.subr.mxu0 0.0
    %1913 = vmatpush1.msra.mxu0 0.0
    %1914 = vmatprep.subr.mxu0 0.0
    %1915 = vmatpush1.msra.mxu0 0.0
    %1916 = vmatprep.subr.mxu0 0.0
    %1917 = vmatpush1.msra.mxu0 0.0
    %1918 = vmatprep.subr.mxu0 0.0
    %1919 = vmatpush1.msra.mxu0 0.0
    %1920 = vmatprep.subr.mxu0 0.0
    %1921 = vmatpush1.msra.mxu0 0.0
    %1922 = vmatprep.subr.mxu0 0.0
    %1923 = vmatpush1.msra.mxu0 0.0
    %1924 = vmatprep.subr.mxu0 0.0
    %1925 = vmatpush1.msra.mxu0 0.0
    %1926 = vmatprep.subr.mxu0 0.0
    %1927 = vmatpush1.msra.mxu0 0.0
    %1928 = vmatprep.subr.mxu0 0.0
    %1929 = vmatpush1.msra.mxu0 0.0
    %1930 = vmatprep.subr.mxu0 0.0
    %1931 = vmatpush1.msra.mxu0 0.0
    %1932 = vmatprep.subr.mxu0 0.0
    %1933 = vmatpush1.msra.mxu0 0.0
    %1934 = vmatprep.subr.mxu0 0.0
    %1935 = vmatpush1.msra.mxu0 0.0
    %1936 = vmatprep.subr.mxu0 0.0
    %1937 = vmatpush1.msra.mxu0 0.0
    %1938 = vmatprep.subr.mxu0 0.0
    %1939 = vmatpush1.msra.mxu0 0.0
    %1940 = vmatprep.subr.mxu0 0.0
    %1941 = vmatpush1.msra.mxu0 0.0
    %1942 = vmatprep.subr.mxu0 0.0
    %1943 = vmatpush1.msra.mxu0 0.0
    %1944 = vmatprep.mubr.f32.mxu0 0.0
    %1945 = vmatmul.mubr.f32.gmra.mrb[0].mxu0 %v1856
    %v1946 = vpop.f32.mrb[0].mxu0
    %v1947 = vadd.f32 %v1878, %v1946
    %v1948 = vpop.f32.mrb[0].mxu0
    %1949 = vdwg.mxu0
    %v1950 = vmax.f32 %v1947, 0.0
    %v1951 = vld [vmem:[%s9] sm:$0xff]
    %v1952 = vld [vmem:[%s9 + $0x8] sm:$0xff]
    %v1953 = vld [vmem:[%s9 + $0x10] sm:$0xff]
    %v1954 = vld [vmem:[%s9 + $0x18] sm:$0xff]
    %v1955 = vld [vmem:[#allocation4] sm:$0x1]
    %v1957 = vlaneseq
    %v1958 = vshrl.u32 %v1957, 7
    %v1959 = vsub.s32 0, %v1958
    %v1960 = vrot.slane %v1955, %v1959
    %vm1962 = vcmask 261120
    %v1964 = vsel %vm1962, %v1950, 0
    %1966 = vmatprep.subr.mxu0 0.0
    %1967 = vmatpush1.msra.mxu0 %v1951
    %1968 = vmatprep.subr.mxu0 0.0
    %1969 = vmatpush1.msra.mxu0 %v1952
    %1970 = vmatprep.subr.mxu0 0.0
    %1971 = vmatpush1.msra.mxu0 %v1953
    %1972 = vmatprep.subr.mxu0 0.0
    %1973 = vmatpush1.msra.mxu0 %v1954
    %1974 = vmatprep.subr.mxu0 0.0
    %1975 = vmatpush1.msra.mxu0 0.0
    %1976 = vmatprep.subr.mxu0 0.0
    %1977 = vmatpush1.msra.mxu0 0.0
    %1978 = vmatprep.subr.mxu0 0.0
    %1979 = vmatpush1.msra.mxu0 0.0
    %1980 = vmatprep.subr.mxu0 0.0
    %1981 = vmatpush1.msra.mxu0 0.0
    %1982 = vmatprep.subr.mxu0 0.0
    %1983 = vmatpush1.msra.mxu0 0.0
    %1984 = vmatprep.subr.mxu0 0.0
    %1985 = vmatpush1.msra.mxu0 0.0
    %1986 = vmatprep.subr.mxu0 0.0
    %1987 = vmatpush1.msra.mxu0 0.0
    %1988 = vmatprep.subr.mxu0 0.0
    %1989 = vmatpush1.msra.mxu0 0.0
    %1990 = vmatprep.subr.mxu0 0.0
    %1991 = vmatpush1.msra.mxu0 0.0
    %1992 = vmatprep.subr.mxu0 0.0
    %1993 = vmatpush1.msra.mxu0 0.0
    %1994 = vmatprep.subr.mxu0 0.0
    %1995 = vmatpush1.msra.mxu0 0.0
    %1996 = vmatprep.subr.mxu0 0.0
    %1997 = vmatpush1.msra.mxu0 0.0
    %1998 = vmatprep.subr.mxu0 0.0
    %1999 = vmatpush1.msra.mxu0 0.0
    %2000 = vmatprep.subr.mxu0 0.0
    %2001 = vmatpush1.msra.mxu0 0.0
    %2002 = vmatprep.subr.mxu0 0.0
    %2003 = vmatpush1.msra.mxu0 0.0
    %2004 = vmatprep.subr.mxu0 0.0
    %2005 = vmatpush1.msra.mxu0 0.0
    %2006 = vmatprep.subr.mxu0 0.0
    %2007 = vmatpush1.msra.mxu0 0.0
    %2008 = vmatprep.subr.mxu0 0.0
    %2009 = vmatpush1.msra.mxu0 0.0
    %2010 = vmatprep.subr.mxu0 0.0
    %2011 = vmatpush1.msra.mxu0 0.0
    %2012 = vmatprep.subr.mxu0 0.0
    %2013 = vmatpush1.msra.mxu0 0.0
    %2014 = vmatprep.subr.mxu0 0.0
    %2015 = vmatpush1.msra.mxu0 0.0
    %2016 = vmatprep.subr.mxu0 0.0
    %2017 = vmatpush1.msra.mxu0 0.0
    %2018 = vmatprep.subr.mxu0 0.0
    %2019 = vmatpush1.msra.mxu0 0.0
    %2020 = vmatprep.subr.mxu0 0.0
    %2021 = vmatpush1.msra.mxu0 0.0
    %2022 = vmatprep.subr.mxu0 0.0
    %2023 = vmatpush1.msra.mxu0 0.0
    %2024 = vmatprep.subr.mxu0 0.0
    %2025 = vmatpush1.msra.mxu0 0.0
    %2026 = vmatprep.subr.mxu0 0.0
    %2027 = vmatpush1.msra.mxu0 0.0
    %2028 = vmatprep.subr.mxu0 0.0
    %2029 = vmatpush1.msra.mxu0 0.0
    %2030 = vmatprep.mubr.f32.mxu0 0.0
    %2031 = vmatmul.mubr.f32.gmra.mrb[0].mxu0 %v1964
    %v2032 = vpop.f32.mrb[0].mxu0
    %v2033 = vadd.f32 %v1960, %v2032
    %v2034 = vpop.f32.mrb[0].mxu0
    %2035 = vdwg.mxu0
    %vm2036 = vcmask 7168
    %2037 = vst.msk [vmem:[%s11] sm:$0xff] %vm2036, %v2033
    // Predicated region
    $region50: #{forward.1} parent=1 // pred_check
      _
    $region51: #{forward.1} parent=1 // pred_check_branch
      %2039 = sbr.rel (0) target = $region53
    $region52: #{forward.1} parent=1 // pred_region
      _
    $region53: #{forward.1} parent=1 // pred_fallthru
      _
    // Predicated region
    $region54: #{forward.1} parent=1 // pred_check
      _
    $region55: #{forward.1} parent=1 // pred_check_branch
      %2041 = sbr.rel (0) target = $region57
    $region56: #{forward.1} parent=1 // pred_region
      _
    $region57: #{forward.1} parent=1 // pred_fallthru
      _
    %2042 = vsyncpa [#allocation6], 1

</llo_original>
